<compile_context>
chip_gen: v6e
topology: v6e:2x2x1
jax: 0.10.0
libtpu: 0.0.40
codegen_flags: <defaults>
</compile_context>

<pallas_src>
import functools

import numpy as np
import jax
import jax.numpy as jnp
from jax import lax
from jax.experimental import pallas as pl
from jax.experimental.pallas import tpu as pltpu

PAD = 4


def _shift_kernel(shift_ref, x_ref, o_ref, tmp_ref, *, h, w, pad, block_n, n_total):
    """Fused replicate-pad + integer-shift crop.

    shift_ref : SMEM (2 * n_padded,) int32, flat per-image [row_shift, col_shift] in [0, 2*pad]
    x_ref     : VMEM (block_n, c, h, w)  unpadded input images
    o_ref     : VMEM (block_n, c, h, w)  shifted output images
    tmp_ref   : VMEM (c, h, w)           per-image scratch holding the row-shifted image
    """
    base = pl.program_id(0) * block_n
    # Hoisted loop invariants (JAX does not CSE broadcast_in_dim / iota).
    row_id = lax.broadcasted_iota(jnp.int32, (h, w), 0)
    col_id = lax.broadcasted_iota(jnp.int32, (h, w), 1)

    def per_image(bi, carry):
        idx = base + bi

        @pl.when(idx < n_total)                    # ragged-tail guard
        def _():
            dy = shift_ref[2 * idx] - pad          # row shift, in [-pad, pad]
            dx = shift_ref[2 * idx + 1] - pad      # col shift, in [-pad, pad]
            img = x_ref[bi]                        # (c, h, w)

            # --- row shift with edge replication: exactly one branch runs (static XLU roll) ---
            for k in range(-pad, pad + 1):
                @pl.when(dy == k)
                def _(k=k):
                    if k == 0:
                        tmp_ref[...] = img
                    elif k > 0:
                        rolled = pltpu.roll(img, h - k, axis=1)   # out[i] = img[(i+k) mod h]
                        tmp_ref[...] = jnp.where(row_id >= h - k, img[:, h - 1:h, :], rolled)
                    else:
                        rolled = pltpu.roll(img, -k, axis=1)
                        tmp_ref[...] = jnp.where(row_id < -k, img[:, 0:1, :], rolled)

            rimg = tmp_ref[...]

            # --- column shift with edge replication, writes the output directly ---
            for k in range(-pad, pad + 1):
                @pl.when(dx == k)
                def _(k=k):
                    if k == 0:
                        o_ref[bi] = rimg
                    elif k > 0:
                        rolled = pltpu.roll(rimg, w - k, axis=2)
                        o_ref[bi] = jnp.where(col_id >= w - k, rimg[:, :, w - 1:w], rolled)
                    else:
                        rolled = pltpu.roll(rimg, -k, axis=2)
                        o_ref[bi] = jnp.where(col_id < -k, rimg[:, :, 0:1], rolled)

        return carry

    lax.fori_loop(0, block_n, per_image, 0)


def _round_up(v, m):
    return -(-v // m) * m


def _choose_blocking(n, c, h, w, itemsize):
    """Images per grid step, grid length, and explicit scoped-VMEM limit.

    Sizes with (8,128) tile padding (w occupies full 128-lane tiles).  The double-buffered
    in+out blocks are kept under a conservative budget so they fit v7x's 64 MiB physical /
    32 MiB scoped VMEM and can be covered by an explicit vmem_limit on v5e (16 MiB default).
    """
    img_tile_bytes = c * _round_up(h, 8) * _round_up(w, 128) * itemsize
    budget = 16 * 1024 * 1024                       # target for 2 bufs x (in + out)
    max_bn = max(1, budget // (4 * img_tile_bytes))
    bn = max(1, min(n, 32, max_bn))
    steps = -(-n // bn)
    if steps > 1 and steps % 2 == 1:                # even grid length -> both v7x TCs stay busy
        bn = -(-n // (steps + 1))
    steps = -(-n // bn)
    vmem_limit = 4 * bn * img_tile_bytes + img_tile_bytes + (8 << 20)   # blocks + scratch + headroom
    return bn, steps, int(min(vmem_limit, 64 << 20))


def _pallas_shift(x, shifts, pad):
    """x: (n, c, h, w); shifts: (2n,) int32 flat [row, col] per image -> (n, c, h, w)."""
    n, c, h, w = x.shape
    itemsize = jnp.dtype(x.dtype).itemsize
    bn, steps, vmem_limit = _choose_blocking(n, c, h, w, itemsize)

    total = bn * steps
    if total != n:  # pad shift table so a (guarded) tail never indexes past it
        shifts = jnp.concatenate(
            [shifts, jnp.full((2 * (total - n),), pad, dtype=jnp.int32)])

    kernel = functools.partial(_shift_kernel, h=h, w=w, pad=pad, block_n=bn, n_total=n)
    return pl.pallas_call(
        kernel,
        out_shape=jax.ShapeDtypeStruct((n, c, h, w), x.dtype),
        grid_spec=pltpu.PrefetchScalarGridSpec(
            num_scalar_prefetch=1,                  # shifts -> SMEM
            grid=(steps,),
            in_specs=[pl.BlockSpec((bn, c, h, w), lambda i, _s: (i, 0, 0, 0))],
            out_specs=pl.BlockSpec((bn, c, h, w), lambda i, _s: (i, 0, 0, 0)),
            scratch_shapes=[pltpu.VMEM((c, h, w), x.dtype)],
        ),
        compiler_params=pltpu.CompilerParams(
            dimension_semantics=("parallel",),
            vmem_limit_bytes=vmem_limit,
        ),
    )(shifts, x)


def _random_shift_forward(x, shift_int=None, key=None, pad=PAD):
    """Mirrors RandomShiftsAug._forward.  x: (l, b, c, h, w); shift_int: (l*b, 2) ints in [0, 2*pad]."""
    l, b, c, h, w = x.shape
    channel_first = True
    if c > 10:
        # TODO(synk): add a dedicated NHWC kernel variant to avoid these two full-tensor HBM
        #             transpose passes for channel-last inputs.
        channel_first = False
        x = jnp.transpose(x, (0, 1, 4, 2, 3))       # l b h w c -> l b c h w
        l, b, c, h, w = x.shape
    n = l * b
    # TODO(synk): non-square images give fractional source offsets under the torch grid_sample
    #             math (max_dim normalization); this kernel implements the exact integer-crop case.
    assert h == w, "kernel assumes square images (grid step == 1 source pixel)"
    assert h > pad and w > pad, "shift magnitude must be smaller than the image"
    x = x.reshape(n, c, h, w)

    if shift_int is None:
        assert key is not None
        shift_int = jax.random.randint(key, (n, 2), 0, 2 * pad + 1, dtype=jnp.int32)
    shift_int = shift_int.astype(jnp.int32)

    # torch shift layout is (x, y): shift[:, 0] -> column offset, shift[:, 1] -> row offset.
    shifts = jnp.stack([shift_int[:, 1], shift_int[:, 0]], axis=1).reshape(-1)

    out = _pallas_shift(x, shifts, pad).reshape(l, b, c, h, w)
    if not channel_first:
        out = jnp.transpose(out, (0, 1, 3, 4, 2))
    return out


def random_shifts_aug(x, key, pad=PAD, shift_together_if_cat=False, same_shift_if_cat=True):
    """Mirrors RandomShiftsAug.forward (pad=4, shift_together_if_cat=False, same_shift_if_cat=True).
    Note: like the torch module, the w == 2*h split heuristic is evaluated on the raw (unpermuted) shape.
    """
    l, b, c, h, w = x.shape
    if w == 2 * h and not shift_together_if_cat:
        img1, img2 = x[..., :h], x[..., h:]
        if same_shift_if_cat:
            shift = jax.random.randint(key, (l * b, 2), 0, 2 * pad + 1, dtype=jnp.int32)
            o1 = _random_shift_forward(img1, shift_int=shift, pad=pad)
            o2 = _random_shift_forward(img2, shift_int=shift, pad=pad)
        else:
            k1, k2 = jax.random.split(key)
            o1 = _random_shift_forward(img1, key=k1, pad=pad)
            o2 = _random_shift_forward(img2, key=k2, pad=pad)
        return jnp.concatenate([o1, o2], axis=-1)
    return _random_shift_forward(x, key=key, pad=pad)


if __name__ == "__main__":
    key = jax.random.PRNGKey(0)
    kx, ks = jax.random.split(key)

    # (l, b, c, h, w) -- channel-first (c <= 10), square images
    x = jax.random.normal(kx, (2, 2, 4, 16, 16), dtype=jnp.float32)

    out = random_shifts_aug(x, ks)
    jax.block_until_ready(out)
    assert out.shape == x.shape and out.dtype == x.dtype

    # Exact-semantics check: integer shift == crop of the replicate-padded image starting at
    # (shift_y, shift_x).  The kernel only moves/selects elements, so the result is bit-exact.
    n = 2 * 2
    shift = jax.random.randint(ks, (n, 2), 0, 2 * PAD + 1, dtype=jnp.int32)
    out2 = np.asarray(_random_shift_forward(x, shift_int=shift)).reshape(n, 4, 16, 16)
    xp = np.asarray(jnp.pad(x.reshape(n, 4, 16, 16),
                            ((0, 0), (0, 0), (PAD, PAD), (PAD, PAD)), mode="edge"))
    sh = np.asarray(shift)
    ref = np.stack([xp[i, :, sh[i, 1]:sh[i, 1] + 16, sh[i, 0]:sh[i, 0] + 16]
                    for i in range(n)])
    np.testing.assert_array_equal(out2, ref)

    # Concatenated (w == 2*h) branch: same shift applied to both halves.
    x_cat = jax.random.normal(kx, (1, 2, 4, 16, 32), dtype=jnp.float32)
    out_cat = random_shifts_aug(x_cat, ks)
    jax.block_until_ready(out_cat)
    assert out_cat.shape == x_cat.shape and out_cat.dtype == x_cat.dtype

    print("KERNEL_OK")
</pallas_src>

<mosaic_0001>
module attributes {stable_mosaic.version = 11 : i64} {
  func.func @_shift_kernel(%arg0: i32, %arg1: memref<8xi32, #tpu.memory_space<smem>>, %arg2: memref<4x4x16x16xf32, #tpu.memory_space<vmem>>, %arg3: memref<4x4x16x16xf32, #tpu.memory_space<vmem>>, %arg4: memref<4x16x16xf32, #tpu.memory_space<vmem>>) attributes {dimension_semantics = [#tpu.dimension_semantics<parallel>], iteration_bounds = array<i64: 1>, scalar_prefetch = 1 : i64, scratch_operands = 1 : i64, tpu.core_type = #tpu.core_type<tc>, window_params = [{transform_indices = @transform_0, window_bounds = array<i64: 4, 4, 16, 16>}, {transform_indices = @transform_1, window_bounds = array<i64: 4, 4, 16, 16>}]} {
    %c4_i32 = arith.constant 4 : i32
    %0 = arith.muli %arg0, %c4_i32 : i32
    %1 = tpu.iota {dimensions = array<i32: 0>} : vector<16x16xi32>
    %2 = tpu.iota {dimensions = array<i32: 1>} : vector<16x16xi32>
    %c0_i32 = arith.constant 0 : i32
    %c4_i32_0 = arith.constant 4 : i32
    %3 = arith.addi %c0_i32, %c4_i32_0 : i32
    %c1_i32 = arith.constant 1 : i32
    scf.for %arg5 = %c0_i32 to %3 step %c1_i32  : i32 {
      %4 = arith.addi %0, %arg5 : i32
      %c4_i32_2 = arith.constant 4 : i32
      %5 = arith.cmpi slt, %4, %c4_i32_2 : i32
      %6 = arith.extui %5 : i1 to i32
      %c0_i32_3 = arith.constant 0 : i32
      %7 = arith.cmpi ne, %6, %c0_i32_3 : i32
      scf.if %7 {
        %c2_i32 = arith.constant 2 : i32
        %8 = arith.muli %c2_i32, %4 : i32
        %9 = arith.index_cast %8 : i32 to index
        %10 = memref.load %arg1[%9] : memref<8xi32, #tpu.memory_space<smem>>
        %c4_i32_4 = arith.constant 4 : i32
        %11 = arith.subi %10, %c4_i32_4 : i32
        %c2_i32_5 = arith.constant 2 : i32
        %12 = arith.muli %c2_i32_5, %4 : i32
        %c1_i32_6 = arith.constant 1 : i32
        %13 = arith.addi %12, %c1_i32_6 : i32
        %14 = arith.index_cast %13 : i32 to index
        %15 = memref.load %arg1[%14] : memref<8xi32, #tpu.memory_space<smem>>
        %c4_i32_7 = arith.constant 4 : i32
        %16 = arith.subi %15, %c4_i32_7 : i32
        %17 = arith.index_cast %arg5 : i32 to index
        %c0 = arith.constant 0 : index
        %c0_8 = arith.constant 0 : index
        %c0_9 = arith.constant 0 : index
        %18 = vector.load %arg2[%17, %c0, %c0_8, %c0_9] : memref<4x4x16x16xf32, #tpu.memory_space<vmem>>, vector<1x4x16x16xf32>
        %19 = vector.shape_cast %18 : vector<1x4x16x16xf32> to vector<4x16x16xf32>
        %c-4_i32 = arith.constant -4 : i32
        %20 = arith.cmpi eq, %11, %c-4_i32 : i32
        %21 = arith.extui %20 : i1 to i32
        %c0_i32_10 = arith.constant 0 : i32
        %22 = arith.cmpi ne, %21, %c0_i32_10 : i32
        scf.if %22 {
          %c4_i32_44 = arith.constant 4 : i32
          %75 = tpu.dynamic_rotate %19 by %c4_i32_44 dim 1 : vector<4x16x16xf32>, i32 -> vector<4x16x16xf32>
          %c4_i32_45 = arith.constant 4 : i32
          %76 = vector.broadcast %c4_i32_45 : i32 to vector<16x16xi32>
          %77 = arith.cmpi slt, %1, %76 : vector<16x16xi32>
          %78 = vector.extract_strided_slice %19 {offsets = [0, 0, 0], sizes = [4, 1, 16], strides = [1, 1, 1]} : vector<4x16x16xf32> to vector<4x1x16xf32>
          %79 = vector.shape_cast %77 : vector<16x16xi1> to vector<1x16x16xi1>
          %80 = vector.broadcast %79 : vector<1x16x16xi1> to vector<4x16x16xi1>
          %81 = vector.shape_cast %78 : vector<4x1x16xf32> to vector<4x1x16xf32>
          %82 = vector.broadcast %81 : vector<4x1x16xf32> to vector<4x16x16xf32>
          %83 = arith.select %80, %82, %75 : vector<4x16x16xi1>, vector<4x16x16xf32>
          %c0_46 = arith.constant 0 : index
          %c0_47 = arith.constant 0 : index
          %c0_48 = arith.constant 0 : index
          %84 = vector.load %arg4[%c0_46, %c0_47, %c0_48] : memref<4x16x16xf32, #tpu.memory_space<vmem>>, vector<4x16x16xf32>
          tpu.vector_store %arg4[%c0_46, %c0_47, %c0_48], %83 {strides = array<i32>} : memref<4x16x16xf32, #tpu.memory_space<vmem>>, vector<4x16x16xf32>,
        } else {
        }
        %c-3_i32 = arith.constant -3 : i32
        %23 = arith.cmpi eq, %11, %c-3_i32 : i32
        %24 = arith.extui %23 : i1 to i32
        %c0_i32_11 = arith.constant 0 : i32
        %25 = arith.cmpi ne, %24, %c0_i32_11 : i32
        scf.if %25 {
          %c3_i32_44 = arith.constant 3 : i32
          %75 = tpu.dynamic_rotate %19 by %c3_i32_44 dim 1 : vector<4x16x16xf32>, i32 -> vector<4x16x16xf32>
          %c3_i32_45 = arith.constant 3 : i32
          %76 = vector.broadcast %c3_i32_45 : i32 to vector<16x16xi32>
          %77 = arith.cmpi slt, %1, %76 : vector<16x16xi32>
          %78 = vector.extract_strided_slice %19 {offsets = [0, 0, 0], sizes = [4, 1, 16], strides = [1, 1, 1]} : vector<4x16x16xf32> to vector<4x1x16xf32>
          %79 = vector.shape_cast %77 : vector<16x16xi1> to vector<1x16x16xi1>
          %80 = vector.broadcast %79 : vector<1x16x16xi1> to vector<4x16x16xi1>
          %81 = vector.shape_cast %78 : vector<4x1x16xf32> to vector<4x1x16xf32>
          %82 = vector.broadcast %81 : vector<4x1x16xf32> to vector<4x16x16xf32>
          %83 = arith.select %80, %82, %75 : vector<4x16x16xi1>, vector<4x16x16xf32>
          %c0_46 = arith.constant 0 : index
          %c0_47 = arith.constant 0 : index
          %c0_48 = arith.constant 0 : index
          %84 = vector.load %arg4[%c0_46, %c0_47, %c0_48] : memref<4x16x16xf32, #tpu.memory_space<vmem>>, vector<4x16x16xf32>
          tpu.vector_store %arg4[%c0_46, %c0_47, %c0_48], %83 {strides = array<i32>} : memref<4x16x16xf32, #tpu.memory_space<vmem>>, vector<4x16x16xf32>,
        } else {
        }
        %c-2_i32 = arith.constant -2 : i32
        %26 = arith.cmpi eq, %11, %c-2_i32 : i32
        %27 = arith.extui %26 : i1 to i32
        %c0_i32_12 = arith.constant 0 : i32
        %28 = arith.cmpi ne, %27, %c0_i32_12 : i32
        scf.if %28 {
          %c2_i32_44 = arith.constant 2 : i32
          %75 = tpu.dynamic_rotate %19 by %c2_i32_44 dim 1 : vector<4x16x16xf32>, i32 -> vector<4x16x16xf32>
          %c2_i32_45 = arith.constant 2 : i32
          %76 = vector.broadcast %c2_i32_45 : i32 to vector<16x16xi32>
          %77 = arith.cmpi slt, %1, %76 : vector<16x16xi32>
          %78 = vector.extract_strided_slice %19 {offsets = [0, 0, 0], sizes = [4, 1, 16], strides = [1, 1, 1]} : vector<4x16x16xf32> to vector<4x1x16xf32>
          %79 = vector.shape_cast %77 : vector<16x16xi1> to vector<1x16x16xi1>
          %80 = vector.broadcast %79 : vector<1x16x16xi1> to vector<4x16x16xi1>
          %81 = vector.shape_cast %78 : vector<4x1x16xf32> to vector<4x1x16xf32>
          %82 = vector.broadcast %81 : vector<4x1x16xf32> to vector<4x16x16xf32>
          %83 = arith.select %80, %82, %75 : vector<4x16x16xi1>, vector<4x16x16xf32>
          %c0_46 = arith.constant 0 : index
          %c0_47 = arith.constant 0 : index
          %c0_48 = arith.constant 0 : index
          %84 = vector.load %arg4[%c0_46, %c0_47, %c0_48] : memref<4x16x16xf32, #tpu.memory_space<vmem>>, vector<4x16x16xf32>
          tpu.vector_store %arg4[%c0_46, %c0_47, %c0_48], %83 {strides = array<i32>} : memref<4x16x16xf32, #tpu.memory_space<vmem>>, vector<4x16x16xf32>,
        } else {
        }
        %c-1_i32 = arith.constant -1 : i32
        %29 = arith.cmpi eq, %11, %c-1_i32 : i32
        %30 = arith.extui %29 : i1 to i32
        %c0_i32_13 = arith.constant 0 : i32
        %31 = arith.cmpi ne, %30, %c0_i32_13 : i32
        scf.if %31 {
          %c1_i32_44 = arith.constant 1 : i32
          %75 = tpu.dynamic_rotate %19 by %c1_i32_44 dim 1 : vector<4x16x16xf32>, i32 -> vector<4x16x16xf32>
          %c1_i32_45 = arith.constant 1 : i32
          %76 = vector.broadcast %c1_i32_45 : i32 to vector<16x16xi32>
          %77 = arith.cmpi slt, %1, %76 : vector<16x16xi32>
          %78 = vector.extract_strided_slice %19 {offsets = [0, 0, 0], sizes = [4, 1, 16], strides = [1, 1, 1]} : vector<4x16x16xf32> to vector<4x1x16xf32>
          %79 = vector.shape_cast %77 : vector<16x16xi1> to vector<1x16x16xi1>
          %80 = vector.broadcast %79 : vector<1x16x16xi1> to vector<4x16x16xi1>
          %81 = vector.shape_cast %78 : vector<4x1x16xf32> to vector<4x1x16xf32>
          %82 = vector.broadcast %81 : vector<4x1x16xf32> to vector<4x16x16xf32>
          %83 = arith.select %80, %82, %75 : vector<4x16x16xi1>, vector<4x16x16xf32>
          %c0_46 = arith.constant 0 : index
          %c0_47 = arith.constant 0 : index
          %c0_48 = arith.constant 0 : index
          %84 = vector.load %arg4[%c0_46, %c0_47, %c0_48] : memref<4x16x16xf32, #tpu.memory_space<vmem>>, vector<4x16x16xf32>
          tpu.vector_store %arg4[%c0_46, %c0_47, %c0_48], %83 {strides = array<i32>} : memref<4x16x16xf32, #tpu.memory_space<vmem>>, vector<4x16x16xf32>,
        } else {
        }
        %c0_i32_14 = arith.constant 0 : i32
        %32 = arith.cmpi eq, %11, %c0_i32_14 : i32
        %33 = arith.extui %32 : i1 to i32
        %c0_i32_15 = arith.constant 0 : i32
        %34 = arith.cmpi ne, %33, %c0_i32_15 : i32
        scf.if %34 {
          %c0_44 = arith.constant 0 : index
          %c0_45 = arith.constant 0 : index
          %c0_46 = arith.constant 0 : index
          %75 = vector.load %arg4[%c0_44, %c0_45, %c0_46] : memref<4x16x16xf32, #tpu.memory_space<vmem>>, vector<4x16x16xf32>
          tpu.vector_store %arg4[%c0_44, %c0_45, %c0_46], %19 {strides = array<i32>} : memref<4x16x16xf32, #tpu.memory_space<vmem>>, vector<4x16x16xf32>,
        } else {
        }
        %c1_i32_16 = arith.constant 1 : i32
        %35 = arith.cmpi eq, %11, %c1_i32_16 : i32
        %36 = arith.extui %35 : i1 to i32
        %c0_i32_17 = arith.constant 0 : i32
        %37 = arith.cmpi ne, %36, %c0_i32_17 : i32
        scf.if %37 {
          %c15_i32 = arith.constant 15 : i32
          %75 = tpu.dynamic_rotate %19 by %c15_i32 dim 1 : vector<4x16x16xf32>, i32 -> vector<4x16x16xf32>
          %c15_i32_44 = arith.constant 15 : i32
          %76 = vector.broadcast %c15_i32_44 : i32 to vector<16x16xi32>
          %77 = arith.cmpi sge, %1, %76 : vector<16x16xi32>
          %78 = vector.extract_strided_slice %19 {offsets = [0, 15, 0], sizes = [4, 1, 16], strides = [1, 1, 1]} : vector<4x16x16xf32> to vector<4x1x16xf32>
          %79 = vector.shape_cast %77 : vector<16x16xi1> to vector<1x16x16xi1>
          %80 = vector.broadcast %79 : vector<1x16x16xi1> to vector<4x16x16xi1>
          %81 = vector.shape_cast %78 : vector<4x1x16xf32> to vector<4x1x16xf32>
          %82 = vector.broadcast %81 : vector<4x1x16xf32> to vector<4x16x16xf32>
          %83 = arith.select %80, %82, %75 : vector<4x16x16xi1>, vector<4x16x16xf32>
          %c0_45 = arith.constant 0 : index
          %c0_46 = arith.constant 0 : index
          %c0_47 = arith.constant 0 : index
          %84 = vector.load %arg4[%c0_45, %c0_46, %c0_47] : memref<4x16x16xf32, #tpu.memory_space<vmem>>, vector<4x16x16xf32>
          tpu.vector_store %arg4[%c0_45, %c0_46, %c0_47], %83 {strides = array<i32>} : memref<4x16x16xf32, #tpu.memory_space<vmem>>, vector<4x16x16xf32>,
        } else {
        }
        %c2_i32_18 = arith.constant 2 : i32
        %38 = arith.cmpi eq, %11, %c2_i32_18 : i32
        %39 = arith.extui %38 : i1 to i32
        %c0_i32_19 = arith.constant 0 : i32
        %40 = arith.cmpi ne, %39, %c0_i32_19 : i32
        scf.if %40 {
          %c14_i32 = arith.constant 14 : i32
          %75 = tpu.dynamic_rotate %19 by %c14_i32 dim 1 : vector<4x16x16xf32>, i32 -> vector<4x16x16xf32>
          %c14_i32_44 = arith.constant 14 : i32
          %76 = vector.broadcast %c14_i32_44 : i32 to vector<16x16xi32>
          %77 = arith.cmpi sge, %1, %76 : vector<16x16xi32>
          %78 = vector.extract_strided_slice %19 {offsets = [0, 15, 0], sizes = [4, 1, 16], strides = [1, 1, 1]} : vector<4x16x16xf32> to vector<4x1x16xf32>
          %79 = vector.shape_cast %77 : vector<16x16xi1> to vector<1x16x16xi1>
          %80 = vector.broadcast %79 : vector<1x16x16xi1> to vector<4x16x16xi1>
          %81 = vector.shape_cast %78 : vector<4x1x16xf32> to vector<4x1x16xf32>
          %82 = vector.broadcast %81 : vector<4x1x16xf32> to vector<4x16x16xf32>
          %83 = arith.select %80, %82, %75 : vector<4x16x16xi1>, vector<4x16x16xf32>
          %c0_45 = arith.constant 0 : index
          %c0_46 = arith.constant 0 : index
          %c0_47 = arith.constant 0 : index
          %84 = vector.load %arg4[%c0_45, %c0_46, %c0_47] : memref<4x16x16xf32, #tpu.memory_space<vmem>>, vector<4x16x16xf32>
          tpu.vector_store %arg4[%c0_45, %c0_46, %c0_47], %83 {strides = array<i32>} : memref<4x16x16xf32, #tpu.memory_space<vmem>>, vector<4x16x16xf32>,
        } else {
        }
        %c3_i32 = arith.constant 3 : i32
        %41 = arith.cmpi eq, %11, %c3_i32 : i32
        %42 = arith.extui %41 : i1 to i32
        %c0_i32_20 = arith.constant 0 : i32
        %43 = arith.cmpi ne, %42, %c0_i32_20 : i32
        scf.if %43 {
          %c13_i32 = arith.constant 13 : i32
          %75 = tpu.dynamic_rotate %19 by %c13_i32 dim 1 : vector<4x16x16xf32>, i32 -> vector<4x16x16xf32>
          %c13_i32_44 = arith.constant 13 : i32
          %76 = vector.broadcast %c13_i32_44 : i32 to vector<16x16xi32>
          %77 = arith.cmpi sge, %1, %76 : vector<16x16xi32>
          %78 = vector.extract_strided_slice %19 {offsets = [0, 15, 0], sizes = [4, 1, 16], strides = [1, 1, 1]} : vector<4x16x16xf32> to vector<4x1x16xf32>
          %79 = vector.shape_cast %77 : vector<16x16xi1> to vector<1x16x16xi1>
          %80 = vector.broadcast %79 : vector<1x16x16xi1> to vector<4x16x16xi1>
          %81 = vector.shape_cast %78 : vector<4x1x16xf32> to vector<4x1x16xf32>
          %82 = vector.broadcast %81 : vector<4x1x16xf32> to vector<4x16x16xf32>
          %83 = arith.select %80, %82, %75 : vector<4x16x16xi1>, vector<4x16x16xf32>
          %c0_45 = arith.constant 0 : index
          %c0_46 = arith.constant 0 : index
          %c0_47 = arith.constant 0 : index
          %84 = vector.load %arg4[%c0_45, %c0_46, %c0_47] : memref<4x16x16xf32, #tpu.memory_space<vmem>>, vector<4x16x16xf32>
          tpu.vector_store %arg4[%c0_45, %c0_46, %c0_47], %83 {strides = array<i32>} : memref<4x16x16xf32, #tpu.memory_space<vmem>>, vector<4x16x16xf32>,
        } else {
        }
        %c4_i32_21 = arith.constant 4 : i32
        %44 = arith.cmpi eq, %11, %c4_i32_21 : i32
        %45 = arith.extui %44 : i1 to i32
        %c0_i32_22 = arith.constant 0 : i32
        %46 = arith.cmpi ne, %45, %c0_i32_22 : i32
        scf.if %46 {
          %c12_i32 = arith.constant 12 : i32
          %75 = tpu.dynamic_rotate %19 by %c12_i32 dim 1 : vector<4x16x16xf32>, i32 -> vector<4x16x16xf32>
          %c12_i32_44 = arith.constant 12 : i32
          %76 = vector.broadcast %c12_i32_44 : i32 to vector<16x16xi32>
          %77 = arith.cmpi sge, %1, %76 : vector<16x16xi32>
          %78 = vector.extract_strided_slice %19 {offsets = [0, 15, 0], sizes = [4, 1, 16], strides = [1, 1, 1]} : vector<4x16x16xf32> to vector<4x1x16xf32>
          %79 = vector.shape_cast %77 : vector<16x16xi1> to vector<1x16x16xi1>
          %80 = vector.broadcast %79 : vector<1x16x16xi1> to vector<4x16x16xi1>
          %81 = vector.shape_cast %78 : vector<4x1x16xf32> to vector<4x1x16xf32>
          %82 = vector.broadcast %81 : vector<4x1x16xf32> to vector<4x16x16xf32>
          %83 = arith.select %80, %82, %75 : vector<4x16x16xi1>, vector<4x16x16xf32>
          %c0_45 = arith.constant 0 : index
          %c0_46 = arith.constant 0 : index
          %c0_47 = arith.constant 0 : index
          %84 = vector.load %arg4[%c0_45, %c0_46, %c0_47] : memref<4x16x16xf32, #tpu.memory_space<vmem>>, vector<4x16x16xf32>
          tpu.vector_store %arg4[%c0_45, %c0_46, %c0_47], %83 {strides = array<i32>} : memref<4x16x16xf32, #tpu.memory_space<vmem>>, vector<4x16x16xf32>,
        } else {
        }
        %c0_23 = arith.constant 0 : index
        %c0_24 = arith.constant 0 : index
        %c0_25 = arith.constant 0 : index
        %47 = vector.load %arg4[%c0_23, %c0_24, %c0_25] : memref<4x16x16xf32, #tpu.memory_space<vmem>>, vector<4x16x16xf32>
        %c-4_i32_26 = arith.constant -4 : i32
        %48 = arith.cmpi eq, %16, %c-4_i32_26 : i32
        %49 = arith.extui %48 : i1 to i32
        %c0_i32_27 = arith.constant 0 : i32
        %50 = arith.cmpi ne, %49, %c0_i32_27 : i32
        scf.if %50 {
          %c4_i32_44 = arith.constant 4 : i32
          %75 = tpu.dynamic_rotate %47 by %c4_i32_44 dim 2 : vector<4x16x16xf32>, i32 -> vector<4x16x16xf32>
          %c4_i32_45 = arith.constant 4 : i32
          %76 = vector.broadcast %c4_i32_45 : i32 to vector<16x16xi32>
          %77 = arith.cmpi slt, %2, %76 : vector<16x16xi32>
          %78 = vector.extract_strided_slice %47 {offsets = [0, 0, 0], sizes = [4, 16, 1], strides = [1, 1, 1]} : vector<4x16x16xf32> to vector<4x16x1xf32>
          %79 = vector.shape_cast %77 : vector<16x16xi1> to vector<1x16x16xi1>
          %80 = vector.broadcast %79 : vector<1x16x16xi1> to vector<4x16x16xi1>
          %81 = vector.shape_cast %78 : vector<4x16x1xf32> to vector<4x16x1xf32>
          %82 = vector.broadcast %81 : vector<4x16x1xf32> to vector<4x16x16xf32>
          %83 = arith.select %80, %82, %75 : vector<4x16x16xi1>, vector<4x16x16xf32>
          %84 = arith.index_cast %arg5 : i32 to index
          %c0_46 = arith.constant 0 : index
          %c0_47 = arith.constant 0 : index
          %c0_48 = arith.constant 0 : index
          %85 = vector.load %arg3[%84, %c0_46, %c0_47, %c0_48] : memref<4x4x16x16xf32, #tpu.memory_space<vmem>>, vector<1x4x16x16xf32>
          %86 = vector.shape_cast %85 : vector<1x4x16x16xf32> to vector<4x16x16xf32>
          %87 = vector.shape_cast %83 : vector<4x16x16xf32> to vector<1x4x16x16xf32>
          tpu.vector_store %arg3[%84, %c0_46, %c0_47, %c0_48], %87 {strides = array<i32>} : memref<4x4x16x16xf32, #tpu.memory_space<vmem>>, vector<1x4x16x16xf32>,
        } else {
        }
        %c-3_i32_28 = arith.constant -3 : i32
        %51 = arith.cmpi eq, %16, %c-3_i32_28 : i32
        %52 = arith.extui %51 : i1 to i32
        %c0_i32_29 = arith.constant 0 : i32
        %53 = arith.cmpi ne, %52, %c0_i32_29 : i32
        scf.if %53 {
          %c3_i32_44 = arith.constant 3 : i32
          %75 = tpu.dynamic_rotate %47 by %c3_i32_44 dim 2 : vector<4x16x16xf32>, i32 -> vector<4x16x16xf32>
          %c3_i32_45 = arith.constant 3 : i32
          %76 = vector.broadcast %c3_i32_45 : i32 to vector<16x16xi32>
          %77 = arith.cmpi slt, %2, %76 : vector<16x16xi32>
          %78 = vector.extract_strided_slice %47 {offsets = [0, 0, 0], sizes = [4, 16, 1], strides = [1, 1, 1]} : vector<4x16x16xf32> to vector<4x16x1xf32>
          %79 = vector.shape_cast %77 : vector<16x16xi1> to vector<1x16x16xi1>
          %80 = vector.broadcast %79 : vector<1x16x16xi1> to vector<4x16x16xi1>
          %81 = vector.shape_cast %78 : vector<4x16x1xf32> to vector<4x16x1xf32>
          %82 = vector.broadcast %81 : vector<4x16x1xf32> to vector<4x16x16xf32>
          %83 = arith.select %80, %82, %75 : vector<4x16x16xi1>, vector<4x16x16xf32>
          %84 = arith.index_cast %arg5 : i32 to index
          %c0_46 = arith.constant 0 : index
          %c0_47 = arith.constant 0 : index
          %c0_48 = arith.constant 0 : index
          %85 = vector.load %arg3[%84, %c0_46, %c0_47, %c0_48] : memref<4x4x16x16xf32, #tpu.memory_space<vmem>>, vector<1x4x16x16xf32>
          %86 = vector.shape_cast %85 : vector<1x4x16x16xf32> to vector<4x16x16xf32>
          %87 = vector.shape_cast %83 : vector<4x16x16xf32> to vector<1x4x16x16xf32>
          tpu.vector_store %arg3[%84, %c0_46, %c0_47, %c0_48], %87 {strides = array<i32>} : memref<4x4x16x16xf32, #tpu.memory_space<vmem>>, vector<1x4x16x16xf32>,
        } else {
        }
        %c-2_i32_30 = arith.constant -2 : i32
        %54 = arith.cmpi eq, %16, %c-2_i32_30 : i32
        %55 = arith.extui %54 : i1 to i32
        %c0_i32_31 = arith.constant 0 : i32
        %56 = arith.cmpi ne, %55, %c0_i32_31 : i32
        scf.if %56 {
          %c2_i32_44 = arith.constant 2 : i32
          %75 = tpu.dynamic_rotate %47 by %c2_i32_44 dim 2 : vector<4x16x16xf32>, i32 -> vector<4x16x16xf32>
          %c2_i32_45 = arith.constant 2 : i32
          %76 = vector.broadcast %c2_i32_45 : i32 to vector<16x16xi32>
          %77 = arith.cmpi slt, %2, %76 : vector<16x16xi32>
          %78 = vector.extract_strided_slice %47 {offsets = [0, 0, 0], sizes = [4, 16, 1], strides = [1, 1, 1]} : vector<4x16x16xf32> to vector<4x16x1xf32>
          %79 = vector.shape_cast %77 : vector<16x16xi1> to vector<1x16x16xi1>
          %80 = vector.broadcast %79 : vector<1x16x16xi1> to vector<4x16x16xi1>
          %81 = vector.shape_cast %78 : vector<4x16x1xf32> to vector<4x16x1xf32>
          %82 = vector.broadcast %81 : vector<4x16x1xf32> to vector<4x16x16xf32>
          %83 = arith.select %80, %82, %75 : vector<4x16x16xi1>, vector<4x16x16xf32>
          %84 = arith.index_cast %arg5 : i32 to index
          %c0_46 = arith.constant 0 : index
          %c0_47 = arith.constant 0 : index
          %c0_48 = arith.constant 0 : index
          %85 = vector.load %arg3[%84, %c0_46, %c0_47, %c0_48] : memref<4x4x16x16xf32, #tpu.memory_space<vmem>>, vector<1x4x16x16xf32>
          %86 = vector.shape_cast %85 : vector<1x4x16x16xf32> to vector<4x16x16xf32>
          %87 = vector.shape_cast %83 : vector<4x16x16xf32> to vector<1x4x16x16xf32>
          tpu.vector_store %arg3[%84, %c0_46, %c0_47, %c0_48], %87 {strides = array<i32>} : memref<4x4x16x16xf32, #tpu.memory_space<vmem>>, vector<1x4x16x16xf32>,
        } else {
        }
        %c-1_i32_32 = arith.constant -1 : i32
        %57 = arith.cmpi eq, %16, %c-1_i32_32 : i32
        %58 = arith.extui %57 : i1 to i32
        %c0_i32_33 = arith.constant 0 : i32
        %59 = arith.cmpi ne, %58, %c0_i32_33 : i32
        scf.if %59 {
          %c1_i32_44 = arith.constant 1 : i32
          %75 = tpu.dynamic_rotate %47 by %c1_i32_44 dim 2 : vector<4x16x16xf32>, i32 -> vector<4x16x16xf32>
          %c1_i32_45 = arith.constant 1 : i32
          %76 = vector.broadcast %c1_i32_45 : i32 to vector<16x16xi32>
          %77 = arith.cmpi slt, %2, %76 : vector<16x16xi32>
          %78 = vector.extract_strided_slice %47 {offsets = [0, 0, 0], sizes = [4, 16, 1], strides = [1, 1, 1]} : vector<4x16x16xf32> to vector<4x16x1xf32>
          %79 = vector.shape_cast %77 : vector<16x16xi1> to vector<1x16x16xi1>
          %80 = vector.broadcast %79 : vector<1x16x16xi1> to vector<4x16x16xi1>
          %81 = vector.shape_cast %78 : vector<4x16x1xf32> to vector<4x16x1xf32>
          %82 = vector.broadcast %81 : vector<4x16x1xf32> to vector<4x16x16xf32>
          %83 = arith.select %80, %82, %75 : vector<4x16x16xi1>, vector<4x16x16xf32>
          %84 = arith.index_cast %arg5 : i32 to index
          %c0_46 = arith.constant 0 : index
          %c0_47 = arith.constant 0 : index
          %c0_48 = arith.constant 0 : index
          %85 = vector.load %arg3[%84, %c0_46, %c0_47, %c0_48] : memref<4x4x16x16xf32, #tpu.memory_space<vmem>>, vector<1x4x16x16xf32>
          %86 = vector.shape_cast %85 : vector<1x4x16x16xf32> to vector<4x16x16xf32>
          %87 = vector.shape_cast %83 : vector<4x16x16xf32> to vector<1x4x16x16xf32>
          tpu.vector_store %arg3[%84, %c0_46, %c0_47, %c0_48], %87 {strides = array<i32>} : memref<4x4x16x16xf32, #tpu.memory_space<vmem>>, vector<1x4x16x16xf32>,
        } else {
        }
        %c0_i32_34 = arith.constant 0 : i32
        %60 = arith.cmpi eq, %16, %c0_i32_34 : i32
        %61 = arith.extui %60 : i1 to i32
        %c0_i32_35 = arith.constant 0 : i32
        %62 = arith.cmpi ne, %61, %c0_i32_35 : i32
        scf.if %62 {
          %75 = arith.index_cast %arg5 : i32 to index
          %c0_44 = arith.constant 0 : index
          %c0_45 = arith.constant 0 : index
          %c0_46 = arith.constant 0 : index
          %76 = vector.load %arg3[%75, %c0_44, %c0_45, %c0_46] : memref<4x4x16x16xf32, #tpu.memory_space<vmem>>, vector<1x4x16x16xf32>
          %77 = vector.shape_cast %76 : vector<1x4x16x16xf32> to vector<4x16x16xf32>
          %78 = vector.shape_cast %47 : vector<4x16x16xf32> to vector<1x4x16x16xf32>
          tpu.vector_store %arg3[%75, %c0_44, %c0_45, %c0_46], %78 {strides = array<i32>} : memref<4x4x16x16xf32, #tpu.memory_space<vmem>>, vector<1x4x16x16xf32>,
        } else {
        }
        %c1_i32_36 = arith.constant 1 : i32
        %63 = arith.cmpi eq, %16, %c1_i32_36 : i32
        %64 = arith.extui %63 : i1 to i32
        %c0_i32_37 = arith.constant 0 : i32
        %65 = arith.cmpi ne, %64, %c0_i32_37 : i32
        scf.if %65 {
          %c15_i32 = arith.constant 15 : i32
          %75 = tpu.dynamic_rotate %47 by %c15_i32 dim 2 : vector<4x16x16xf32>, i32 -> vector<4x16x16xf32>
          %c15_i32_44 = arith.constant 15 : i32
          %76 = vector.broadcast %c15_i32_44 : i32 to vector<16x16xi32>
          %77 = arith.cmpi sge, %2, %76 : vector<16x16xi32>
          %78 = vector.extract_strided_slice %47 {offsets = [0, 0, 15], sizes = [4, 16, 1], strides = [1, 1, 1]} : vector<4x16x16xf32> to vector<4x16x1xf32>
          %79 = vector.shape_cast %77 : vector<16x16xi1> to vector<1x16x16xi1>
          %80 = vector.broadcast %79 : vector<1x16x16xi1> to vector<4x16x16xi1>
          %81 = vector.shape_cast %78 : vector<4x16x1xf32> to vector<4x16x1xf32>
          %82 = vector.broadcast %81 : vector<4x16x1xf32> to vector<4x16x16xf32>
          %83 = arith.select %80, %82, %75 : vector<4x16x16xi1>, vector<4x16x16xf32>
          %84 = arith.index_cast %arg5 : i32 to index
          %c0_45 = arith.constant 0 : index
          %c0_46 = arith.constant 0 : index
          %c0_47 = arith.constant 0 : index
          %85 = vector.load %arg3[%84, %c0_45, %c0_46, %c0_47] : memref<4x4x16x16xf32, #tpu.memory_space<vmem>>, vector<1x4x16x16xf32>
          %86 = vector.shape_cast %85 : vector<1x4x16x16xf32> to vector<4x16x16xf32>
          %87 = vector.shape_cast %83 : vector<4x16x16xf32> to vector<1x4x16x16xf32>
          tpu.vector_store %arg3[%84, %c0_45, %c0_46, %c0_47], %87 {strides = array<i32>} : memref<4x4x16x16xf32, #tpu.memory_space<vmem>>, vector<1x4x16x16xf32>,
        } else {
        }
        %c2_i32_38 = arith.constant 2 : i32
        %66 = arith.cmpi eq, %16, %c2_i32_38 : i32
        %67 = arith.extui %66 : i1 to i32
        %c0_i32_39 = arith.constant 0 : i32
        %68 = arith.cmpi ne, %67, %c0_i32_39 : i32
        scf.if %68 {
          %c14_i32 = arith.constant 14 : i32
          %75 = tpu.dynamic_rotate %47 by %c14_i32 dim 2 : vector<4x16x16xf32>, i32 -> vector<4x16x16xf32>
          %c14_i32_44 = arith.constant 14 : i32
          %76 = vector.broadcast %c14_i32_44 : i32 to vector<16x16xi32>
          %77 = arith.cmpi sge, %2, %76 : vector<16x16xi32>
          %78 = vector.extract_strided_slice %47 {offsets = [0, 0, 15], sizes = [4, 16, 1], strides = [1, 1, 1]} : vector<4x16x16xf32> to vector<4x16x1xf32>
          %79 = vector.shape_cast %77 : vector<16x16xi1> to vector<1x16x16xi1>
          %80 = vector.broadcast %79 : vector<1x16x16xi1> to vector<4x16x16xi1>
          %81 = vector.shape_cast %78 : vector<4x16x1xf32> to vector<4x16x1xf32>
          %82 = vector.broadcast %81 : vector<4x16x1xf32> to vector<4x16x16xf32>
          %83 = arith.select %80, %82, %75 : vector<4x16x16xi1>, vector<4x16x16xf32>
          %84 = arith.index_cast %arg5 : i32 to index
          %c0_45 = arith.constant 0 : index
          %c0_46 = arith.constant 0 : index
          %c0_47 = arith.constant 0 : index
          %85 = vector.load %arg3[%84, %c0_45, %c0_46, %c0_47] : memref<4x4x16x16xf32, #tpu.memory_space<vmem>>, vector<1x4x16x16xf32>
          %86 = vector.shape_cast %85 : vector<1x4x16x16xf32> to vector<4x16x16xf32>
          %87 = vector.shape_cast %83 : vector<4x16x16xf32> to vector<1x4x16x16xf32>
          tpu.vector_store %arg3[%84, %c0_45, %c0_46, %c0_47], %87 {strides = array<i32>} : memref<4x4x16x16xf32, #tpu.memory_space<vmem>>, vector<1x4x16x16xf32>,
        } else {
        }
        %c3_i32_40 = arith.constant 3 : i32
        %69 = arith.cmpi eq, %16, %c3_i32_40 : i32
        %70 = arith.extui %69 : i1 to i32
        %c0_i32_41 = arith.constant 0 : i32
        %71 = arith.cmpi ne, %70, %c0_i32_41 : i32
        scf.if %71 {
          %c13_i32 = arith.constant 13 : i32
          %75 = tpu.dynamic_rotate %47 by %c13_i32 dim 2 : vector<4x16x16xf32>, i32 -> vector<4x16x16xf32>
          %c13_i32_44 = arith.constant 13 : i32
          %76 = vector.broadcast %c13_i32_44 : i32 to vector<16x16xi32>
          %77 = arith.cmpi sge, %2, %76 : vector<16x16xi32>
          %78 = vector.extract_strided_slice %47 {offsets = [0, 0, 15], sizes = [4, 16, 1], strides = [1, 1, 1]} : vector<4x16x16xf32> to vector<4x16x1xf32>
          %79 = vector.shape_cast %77 : vector<16x16xi1> to vector<1x16x16xi1>
          %80 = vector.broadcast %79 : vector<1x16x16xi1> to vector<4x16x16xi1>
          %81 = vector.shape_cast %78 : vector<4x16x1xf32> to vector<4x16x1xf32>
          %82 = vector.broadcast %81 : vector<4x16x1xf32> to vector<4x16x16xf32>
          %83 = arith.select %80, %82, %75 : vector<4x16x16xi1>, vector<4x16x16xf32>
          %84 = arith.index_cast %arg5 : i32 to index
          %c0_45 = arith.constant 0 : index
          %c0_46 = arith.constant 0 : index
          %c0_47 = arith.constant 0 : index
          %85 = vector.load %arg3[%84, %c0_45, %c0_46, %c0_47] : memref<4x4x16x16xf32, #tpu.memory_space<vmem>>, vector<1x4x16x16xf32>
          %86 = vector.shape_cast %85 : vector<1x4x16x16xf32> to vector<4x16x16xf32>
          %87 = vector.shape_cast %83 : vector<4x16x16xf32> to vector<1x4x16x16xf32>
          tpu.vector_store %arg3[%84, %c0_45, %c0_46, %c0_47], %87 {strides = array<i32>} : memref<4x4x16x16xf32, #tpu.memory_space<vmem>>, vector<1x4x16x16xf32>,
        } else {
        }
        %c4_i32_42 = arith.constant 4 : i32
        %72 = arith.cmpi eq, %16, %c4_i32_42 : i32
        %73 = arith.extui %72 : i1 to i32
        %c0_i32_43 = arith.constant 0 : i32
        %74 = arith.cmpi ne, %73, %c0_i32_43 : i32
        scf.if %74 {
          %c12_i32 = arith.constant 12 : i32
          %75 = tpu.dynamic_rotate %47 by %c12_i32 dim 2 : vector<4x16x16xf32>, i32 -> vector<4x16x16xf32>
          %c12_i32_44 = arith.constant 12 : i32
          %76 = vector.broadcast %c12_i32_44 : i32 to vector<16x16xi32>
          %77 = arith.cmpi sge, %2, %76 : vector<16x16xi32>
          %78 = vector.extract_strided_slice %47 {offsets = [0, 0, 15], sizes = [4, 16, 1], strides = [1, 1, 1]} : vector<4x16x16xf32> to vector<4x16x1xf32>
          %79 = vector.shape_cast %77 : vector<16x16xi1> to vector<1x16x16xi1>
          %80 = vector.broadcast %79 : vector<1x16x16xi1> to vector<4x16x16xi1>
          %81 = vector.shape_cast %78 : vector<4x16x1xf32> to vector<4x16x1xf32>
          %82 = vector.broadcast %81 : vector<4x16x1xf32> to vector<4x16x16xf32>
          %83 = arith.select %80, %82, %75 : vector<4x16x16xi1>, vector<4x16x16xf32>
          %84 = arith.index_cast %arg5 : i32 to index
          %c0_45 = arith.constant 0 : index
          %c0_46 = arith.constant 0 : index
          %c0_47 = arith.constant 0 : index
          %85 = vector.load %arg3[%84, %c0_45, %c0_46, %c0_47] : memref<4x4x16x16xf32, #tpu.memory_space<vmem>>, vector<1x4x16x16xf32>
          %86 = vector.shape_cast %85 : vector<1x4x16x16xf32> to vector<4x16x16xf32>
          %87 = vector.shape_cast %83 : vector<4x16x16xf32> to vector<1x4x16x16xf32>
          tpu.vector_store %arg3[%84, %c0_45, %c0_46, %c0_47], %87 {strides = array<i32>} : memref<4x4x16x16xf32, #tpu.memory_space<vmem>>, vector<1x4x16x16xf32>,
        } else {
        }
      } else {
      }
    }
    %c4_i32_1 = arith.constant 4 : i32
    return
  }
  func.func @transform_0(%arg0: i32, %arg1: memref<8xi32, #tpu.memory_space<smem>>) -> (i32, i32, i32, i32) {
    %c0_i32 = arith.constant 0 : i32
    %c0_i32_0 = arith.constant 0 : i32
    %c0_i32_1 = arith.constant 0 : i32
    %c0_i32_2 = arith.constant 0 : i32
    return %arg0, %c0_i32, %c0_i32_0, %c0_i32_1 : i32, i32, i32, i32
  }
  func.func @transform_1(%arg0: i32, %arg1: memref<8xi32, #tpu.memory_space<smem>>) -> (i32, i32, i32, i32) {
    %c0_i32 = arith.constant 0 : i32
    %c0_i32_0 = arith.constant 0 : i32
    %c0_i32_1 = arith.constant 0 : i32
    %c0_i32_2 = arith.constant 0 : i32
    return %arg0, %c0_i32, %c0_i32_0, %c0_i32_1 : i32, i32, i32, i32
  }
}

</mosaic_0001>

<llo_original>
// kernel: tpu_custom_call.1
$region0: #{tpu_custom_call.1}
  #allocation0 [shape = 'u32[]', space=smem, size = 0x4, offset = 0x4, fixed_abs, tag = 'smem constant byte address 0x4 - core index']
  #allocation1 [shape = 'u32[144,128]{1,0:T(1,128)}', space=vmem, size = 0x12000, scoped, tag = 'internal scratch']
  #allocation2 [shape = 'f32[4,16,16]{2,1,0:T(8,128)}', space=vmem, size = 0x8000, scoped, tag = 'scratch operand']
  #allocation3 [shape = 's32[1]{0}', space=sflag, size = 0x4, scoped, tag = 'scoped memory for tpu_custom_call.1']
  #allocation4 [shape = 'u8[512]{0}', space=smem, size = 0x200, scoped, tag = 'prefetched SMEM operand 0']
  %s0 = inlined_call_operand.hbm [shape: s32[8], index: 0, kind: input, shape index: {}]
  %s1 = inlined_call_operand.hbm [shape: f32[4,4,16,16], index: 1, kind: input, shape index: {}]
  %s2 = inlined_call_operand.hbm [shape: f32[4,4,16,16], index: 2, kind: output, shape index: {}]
  %s3 = sld [smem:[#allocation0]]
  $region101: #{tpu_custom_call.1} parent=0
    _
  %s5 = ssub.s32 1, %s3
  %s6 = scalar_select 0, %s5, %s3
  %8 = dma.hbm_to_smem %s0, 16, [#allocation4], [#allocation3]
  %9 = dma.done [#allocation3], 16
  %10 = sfence
  $region1: #{tpu_custom_call.1} parent=0
    #allocation5 [shape = 'u8[131072]{0}', space=vmem, size = 0x20000, scoped, tag = 'input window, operand 1, single buffered']
    #allocation6 [shape = 's32[1]{0}', space=sflag, size = 0x4, scoped, tag = 'scoped memory for tpu_custom_call.1']
    #allocation7 [shape = 's32[1]{0}', space=sflag, size = 0x4, scoped, tag = 'scoped memory for tpu_custom_call.1']
    #allocation8 [shape = 'u8[131072]{0}', space=vmem, size = 0x20000, scoped, tag = 'output window, operand 0, single buffered']
    %11 = vsyncpa [#allocation6], 0
    %12 = vsyncpa [#allocation7], 0
    // Predicated region
    $region2: #{tpu_custom_call.1} parent=1 // pred_check
      _
    $region3: #{tpu_custom_call.1} parent=1 // pred_check_branch
      %14 = sbr.rel (0) target = $region5
    $region4: #{tpu_custom_call.1} parent=1 // pred_region
      %s16 = ssub.s32 4096, 4096
      %17 = vsyncadd [#allocation6], %s16
      %s18 = sshll.u32 [#allocation5], 4
      %s19 = int_to_ptr.vmem [resolvable:$true] %s18
      %24 = dma.hbm_to_vmem [thread:$0]  %s1, 4096, %s19, [#allocation6], 128, 128, 8
    $region5: #{tpu_custom_call.1} parent=1 // pred_fallthru
      _
    // Predicated region
    $region6: #{tpu_custom_call.1} parent=1 // pred_check
      _
    $region7: #{tpu_custom_call.1} parent=1 // pred_check_branch
      %26 = sbr.rel (0) target = $region9
    $region8: #{tpu_custom_call.1} parent=1 // pred_region
      %27 = dma.done [#allocation6], 4096
    $region9: #{tpu_custom_call.1} parent=1 // pred_fallthru
      _
    %s28 = smul.u32 0, 4
    %v29 = vlaneseq
    %v30 = vshrl.u32 %v29, 7
    %v31 = vadd.s32 %v30, 8
    %v32 = vlaneseq
    %v33 = vand.u32 %v32, 127
    loop: start=0, step=1, limit=4
    $region10: #{tpu_custom_call.1} parent=1 // loop_pre_header
      _
    $region11: #{tpu_custom_call.1} parent=1 // loop_header
      %s35 = sphi 0, %s39
      %p36 = scmp.ge.s32.totalorder %s35, 4
    $region12: #{tpu_custom_call.1} parent=1 // loop_header_branch
      %38 = sbr.rel (%p36) target = $region16
    $region13: #{tpu_custom_call.1} parent=1 // loop_body
      %s40 = sadd.s32 %s28, %s35
      %p41 = scmp.lt.s32.totalorder %s40, 4
      // Predicated region
      $region17: #{tpu_custom_call.1} parent=13 // pred_check
        %p42 = pneg %p41
      $region18: #{tpu_custom_call.1} parent=13 // pred_check_branch
        %44 = sbr.rel (%p42) target = $region20
      $region19: #{tpu_custom_call.1} parent=13 // pred_region
        %s45 = smul.u32 %s40, 2
        %s46 = sld [smem:[#allocation4 + %s45]]
        %s47 = ssub.s32 %s46, 4
        %s48 = sadd.s32 %s45, 1
        %s49 = sld [smem:[#allocation4 + %s48]]
        %s50 = ssub.s32 %s49, 4
        %s51 = smul.u32 %s35, 64
        %s52 = scalar_lea.vmem [#allocation5], %s51
        %v53 = vld [vmem:[%s52] sm:$0xff]
        %v54 = vld [vmem:[%s52 + $0x8] sm:$0xff]
        %v55 = vld [vmem:[%s52 + $0x10] sm:$0xff]
        %v56 = vld [vmem:[%s52 + $0x18] sm:$0xff]
        %v57 = vld [vmem:[%s52 + $0x20] sm:$0xff]
        %v58 = vld [vmem:[%s52 + $0x28] sm:$0xff]
        %v59 = vld [vmem:[%s52 + $0x30] sm:$0xff]
        %v60 = vld [vmem:[%s52 + $0x38] sm:$0xff]
        %p61 = scmp.eq.s32.totalorder %s47, 4294967292
        // Predicated region
        $region21: #{tpu_custom_call.1} parent=19 // pred_check
          %p62 = pneg %p61
        $region22: #{tpu_custom_call.1} parent=19 // pred_check_branch
          %64 = sbr.rel (%p62) target = $region24
        $region23: #{tpu_custom_call.1} parent=19 // pred_region
          %v65 = vrot.slane %v53, 4
          %v66 = vrot.slane %v55, 4
          %v67 = vrot.slane %v57, 4
          %v68 = vrot.slane %v59, 4
          %v69 = vrot.slane %v54, 4
          %v70 = vrot.slane %v56, 4
          %v71 = vrot.slane %v58, 4
          %v72 = vrot.slane %v60, 4
          %vm73 = vcmp.lt.s32.totalorder %v30, 4
          %v74 = vsel %vm73, %v65, %v69
          %v75 = vsel %vm73, %v66, %v70
          %v76 = vsel %vm73, %v67, %v71
          %v77 = vsel %vm73, %v68, %v72
          %v78 = vsel %vm73, %v69, %v65
          %v79 = vsel %vm73, %v70, %v66
          %v80 = vsel %vm73, %v71, %v67
          %v81 = vsel %vm73, %v72, %v68
          %vm82 = vcmp.lt.s32.totalorder %v31, 4
          %v83 = vsel %vm73, 1, 0
          %v84 = vsel %vm82, 1, 0
          %vm85 = vcmp.eq.s32.totalorder %v83, 1
          %vm86 = vcmp.eq.s32.totalorder %v84, 1
          %v87 = vlaneseq
          %v88 = vshrl.u32 %v87, 7
          %v89 = vsub.s32 0, %v88
          %v90 = vrot.slane %v53, %v89
          %v91 = vlaneseq
          %v92 = vshrl.u32 %v91, 7
          %v93 = vsub.s32 0, %v92
          %v94 = vrot.slane %v55, %v93
          %v95 = vlaneseq
          %v96 = vshrl.u32 %v95, 7
          %v97 = vsub.s32 0, %v96
          %v98 = vrot.slane %v57, %v97
          %v99 = vlaneseq
          %v100 = vshrl.u32 %v99, 7
          %v101 = vsub.s32 0, %v100
          %v102 = vrot.slane %v59, %v101
          %v103 = vsel %vm85, %v90, %v78
          %v104 = vsel %vm86, %v90, %v74
          %v105 = vsel %vm85, %v94, %v79
          %v106 = vsel %vm86, %v94, %v75
          %v107 = vsel %vm85, %v98, %v80
          %v108 = vsel %vm86, %v98, %v76
          %v109 = vsel %vm85, %v102, %v81
          %v110 = vsel %vm86, %v102, %v77
          %vm111 = vcmask 130048
          %112 = vst.msk [vmem:[#allocation2] sm:$0xff] %vm111, %v103
          %113 = vst.msk [vmem:[#allocation2 + $0x8] sm:$0xff] %vm111, %v104
          %114 = vst.msk [vmem:[#allocation2 + $0x10] sm:$0xff] %vm111, %v105
          %115 = vst.msk [vmem:[#allocation2 + $0x18] sm:$0xff] %vm111, %v106
          %116 = vst.msk [vmem:[#allocation2 + $0x20] sm:$0xff] %vm111, %v107
          %117 = vst.msk [vmem:[#allocation2 + $0x28] sm:$0xff] %vm111, %v108
          %118 = vst.msk [vmem:[#allocation2 + $0x30] sm:$0xff] %vm111, %v109
          %119 = vst.msk [vmem:[#allocation2 + $0x38] sm:$0xff] %vm111, %v110
        $region24: #{tpu_custom_call.1} parent=19 // pred_fallthru
          _
        %p120 = scmp.eq.s32.totalorder %s47, 4294967293
        // Predicated region
        $region25: #{tpu_custom_call.1} parent=19 // pred_check
          %p121 = pneg %p120
        $region26: #{tpu_custom_call.1} parent=19 // pred_check_branch
          %123 = sbr.rel (%p121) target = $region28
        $region27: #{tpu_custom_call.1} parent=19 // pred_region
          %v124 = vrot.slane %v53, 5
          %v125 = vrot.slane %v55, 5
          %v126 = vrot.slane %v57, 5
          %v127 = vrot.slane %v59, 5
          %v128 = vrot.slane %v54, 5
          %v129 = vrot.slane %v56, 5
          %v130 = vrot.slane %v58, 5
          %v131 = vrot.slane %v60, 5
          %vm132 = vcmp.lt.s32.totalorder %v30, 3
          %v133 = vsel %vm132, %v124, %v128
          %v134 = vsel %vm132, %v125, %v129
          %v135 = vsel %vm132, %v126, %v130
          %v136 = vsel %vm132, %v127, %v131
          %v137 = vsel %vm132, %v128, %v124
          %v138 = vsel %vm132, %v129, %v125
          %v139 = vsel %vm132, %v130, %v126
          %v140 = vsel %vm132, %v131, %v127
          %vm141 = vcmp.lt.s32.totalorder %v31, 3
          %v142 = vsel %vm132, 1, 0
          %v143 = vsel %vm141, 1, 0
          %vm144 = vcmp.eq.s32.totalorder %v142, 1
          %vm145 = vcmp.eq.s32.totalorder %v143, 1
          %v146 = vlaneseq
          %v147 = vshrl.u32 %v146, 7
          %v148 = vsub.s32 0, %v147
          %v149 = vrot.slane %v53, %v148
          %v150 = vlaneseq
          %v151 = vshrl.u32 %v150, 7
          %v152 = vsub.s32 0, %v151
          %v153 = vrot.slane %v55, %v152
          %v154 = vlaneseq
          %v155 = vshrl.u32 %v154, 7
          %v156 = vsub.s32 0, %v155
          %v157 = vrot.slane %v57, %v156
          %v158 = vlaneseq
          %v159 = vshrl.u32 %v158, 7
          %v160 = vsub.s32 0, %v159
          %v161 = vrot.slane %v59, %v160
          %v162 = vsel %vm144, %v149, %v137
          %v163 = vsel %vm145, %v149, %v133
          %v164 = vsel %vm144, %v153, %v138
          %v165 = vsel %vm145, %v153, %v134
          %v166 = vsel %vm144, %v157, %v139
          %v167 = vsel %vm145, %v157, %v135
          %v168 = vsel %vm144, %v161, %v140
          %v169 = vsel %vm145, %v161, %v136
          %vm170 = vcmask 130048
          %171 = vst.msk [vmem:[#allocation2] sm:$0xff] %vm170, %v162
          %172 = vst.msk [vmem:[#allocation2 + $0x8] sm:$0xff] %vm170, %v163
          %173 = vst.msk [vmem:[#allocation2 + $0x10] sm:$0xff] %vm170, %v164
          %174 = vst.msk [vmem:[#allocation2 + $0x18] sm:$0xff] %vm170, %v165
          %175 = vst.msk [vmem:[#allocation2 + $0x20] sm:$0xff] %vm170, %v166
          %176 = vst.msk [vmem:[#allocation2 + $0x28] sm:$0xff] %vm170, %v167
          %177 = vst.msk [vmem:[#allocation2 + $0x30] sm:$0xff] %vm170, %v168
          %178 = vst.msk [vmem:[#allocation2 + $0x38] sm:$0xff] %vm170, %v169
        $region28: #{tpu_custom_call.1} parent=19 // pred_fallthru
          _
        %p179 = scmp.eq.s32.totalorder %s47, 4294967294
        // Predicated region
        $region29: #{tpu_custom_call.1} parent=19 // pred_check
          %p180 = pneg %p179
        $region30: #{tpu_custom_call.1} parent=19 // pred_check_branch
          %182 = sbr.rel (%p180) target = $region32
        $region31: #{tpu_custom_call.1} parent=19 // pred_region
          %v183 = vrot.slane %v53, 6
          %v184 = vrot.slane %v55, 6
          %v185 = vrot.slane %v57, 6
          %v186 = vrot.slane %v59, 6
          %v187 = vrot.slane %v54, 6
          %v188 = vrot.slane %v56, 6
          %v189 = vrot.slane %v58, 6
          %v190 = vrot.slane %v60, 6
          %vm191 = vcmp.lt.s32.totalorder %v30, 2
          %v192 = vsel %vm191, %v183, %v187
          %v193 = vsel %vm191, %v184, %v188
          %v194 = vsel %vm191, %v185, %v189
          %v195 = vsel %vm191, %v186, %v190
          %v196 = vsel %vm191, %v187, %v183
          %v197 = vsel %vm191, %v188, %v184
          %v198 = vsel %vm191, %v189, %v185
          %v199 = vsel %vm191, %v190, %v186
          %vm200 = vcmp.lt.s32.totalorder %v31, 2
          %v201 = vsel %vm191, 1, 0
          %v202 = vsel %vm200, 1, 0
          %vm203 = vcmp.eq.s32.totalorder %v201, 1
          %vm204 = vcmp.eq.s32.totalorder %v202, 1
          %v205 = vlaneseq
          %v206 = vshrl.u32 %v205, 7
          %v207 = vsub.s32 0, %v206
          %v208 = vrot.slane %v53, %v207
          %v209 = vlaneseq
          %v210 = vshrl.u32 %v209, 7
          %v211 = vsub.s32 0, %v210
          %v212 = vrot.slane %v55, %v211
          %v213 = vlaneseq
          %v214 = vshrl.u32 %v213, 7
          %v215 = vsub.s32 0, %v214
          %v216 = vrot.slane %v57, %v215
          %v217 = vlaneseq
          %v218 = vshrl.u32 %v217, 7
          %v219 = vsub.s32 0, %v218
          %v220 = vrot.slane %v59, %v219
          %v221 = vsel %vm203, %v208, %v196
          %v222 = vsel %vm204, %v208, %v192
          %v223 = vsel %vm203, %v212, %v197
          %v224 = vsel %vm204, %v212, %v193
          %v225 = vsel %vm203, %v216, %v198
          %v226 = vsel %vm204, %v216, %v194
          %v227 = vsel %vm203, %v220, %v199
          %v228 = vsel %vm204, %v220, %v195
          %vm229 = vcmask 130048
          %230 = vst.msk [vmem:[#allocation2] sm:$0xff] %vm229, %v221
          %231 = vst.msk [vmem:[#allocation2 + $0x8] sm:$0xff] %vm229, %v222
          %232 = vst.msk [vmem:[#allocation2 + $0x10] sm:$0xff] %vm229, %v223
          %233 = vst.msk [vmem:[#allocation2 + $0x18] sm:$0xff] %vm229, %v224
          %234 = vst.msk [vmem:[#allocation2 + $0x20] sm:$0xff] %vm229, %v225
          %235 = vst.msk [vmem:[#allocation2 + $0x28] sm:$0xff] %vm229, %v226
          %236 = vst.msk [vmem:[#allocation2 + $0x30] sm:$0xff] %vm229, %v227
          %237 = vst.msk [vmem:[#allocation2 + $0x38] sm:$0xff] %vm229, %v228
        $region32: #{tpu_custom_call.1} parent=19 // pred_fallthru
          _
        %p238 = scmp.eq.s32.totalorder %s47, 4294967295
        // Predicated region
        $region33: #{tpu_custom_call.1} parent=19 // pred_check
          %p239 = pneg %p238
        $region34: #{tpu_custom_call.1} parent=19 // pred_check_branch
          %241 = sbr.rel (%p239) target = $region36
        $region35: #{tpu_custom_call.1} parent=19 // pred_region
          %v242 = vrot.slane %v53, 7
          %v243 = vrot.slane %v55, 7
          %v244 = vrot.slane %v57, 7
          %v245 = vrot.slane %v59, 7
          %v246 = vrot.slane %v54, 7
          %v247 = vrot.slane %v56, 7
          %v248 = vrot.slane %v58, 7
          %v249 = vrot.slane %v60, 7
          %vm250 = vcmp.lt.s32.totalorder %v30, 1
          %v251 = vsel %vm250, %v242, %v246
          %v252 = vsel %vm250, %v243, %v247
          %v253 = vsel %vm250, %v244, %v248
          %v254 = vsel %vm250, %v245, %v249
          %v255 = vsel %vm250, %v246, %v242
          %v256 = vsel %vm250, %v247, %v243
          %v257 = vsel %vm250, %v248, %v244
          %v258 = vsel %vm250, %v249, %v245
          %vm259 = vcmp.lt.s32.totalorder %v31, 1
          %v260 = vsel %vm250, 1, 0
          %v261 = vsel %vm259, 1, 0
          %vm262 = vcmp.eq.s32.totalorder %v260, 1
          %vm263 = vcmp.eq.s32.totalorder %v261, 1
          %v264 = vlaneseq
          %v265 = vshrl.u32 %v264, 7
          %v266 = vsub.s32 0, %v265
          %v267 = vrot.slane %v53, %v266
          %v268 = vlaneseq
          %v269 = vshrl.u32 %v268, 7
          %v270 = vsub.s32 0, %v269
          %v271 = vrot.slane %v55, %v270
          %v272 = vlaneseq
          %v273 = vshrl.u32 %v272, 7
          %v274 = vsub.s32 0, %v273
          %v275 = vrot.slane %v57, %v274
          %v276 = vlaneseq
          %v277 = vshrl.u32 %v276, 7
          %v278 = vsub.s32 0, %v277
          %v279 = vrot.slane %v59, %v278
          %v280 = vsel %vm262, %v267, %v255
          %v281 = vsel %vm263, %v267, %v251
          %v282 = vsel %vm262, %v271, %v256
          %v283 = vsel %vm263, %v271, %v252
          %v284 = vsel %vm262, %v275, %v257
          %v285 = vsel %vm263, %v275, %v253
          %v286 = vsel %vm262, %v279, %v258
          %v287 = vsel %vm263, %v279, %v254
          %vm288 = vcmask 130048
          %289 = vst.msk [vmem:[#allocation2] sm:$0xff] %vm288, %v280
          %290 = vst.msk [vmem:[#allocation2 + $0x8] sm:$0xff] %vm288, %v281
          %291 = vst.msk [vmem:[#allocation2 + $0x10] sm:$0xff] %vm288, %v282
          %292 = vst.msk [vmem:[#allocation2 + $0x18] sm:$0xff] %vm288, %v283
          %293 = vst.msk [vmem:[#allocation2 + $0x20] sm:$0xff] %vm288, %v284
          %294 = vst.msk [vmem:[#allocation2 + $0x28] sm:$0xff] %vm288, %v285
          %295 = vst.msk [vmem:[#allocation2 + $0x30] sm:$0xff] %vm288, %v286
          %296 = vst.msk [vmem:[#allocation2 + $0x38] sm:$0xff] %vm288, %v287
        $region36: #{tpu_custom_call.1} parent=19 // pred_fallthru
          _
        %p297 = scmp.eq.s32.totalorder %s47, 0
        // Predicated region
        $region37: #{tpu_custom_call.1} parent=19 // pred_check
          %p298 = pneg %p297
        $region38: #{tpu_custom_call.1} parent=19 // pred_check_branch
          %300 = sbr.rel (%p298) target = $region40
        $region39: #{tpu_custom_call.1} parent=19 // pred_region
          %vm301 = vcmask 130048
          %302 = vst.msk [vmem:[#allocation2] sm:$0xff] %vm301, %v53
          %303 = vst.msk [vmem:[#allocation2 + $0x8] sm:$0xff] %vm301, %v54
          %304 = vst.msk [vmem:[#allocation2 + $0x10] sm:$0xff] %vm301, %v55
          %305 = vst.msk [vmem:[#allocation2 + $0x18] sm:$0xff] %vm301, %v56
          %306 = vst.msk [vmem:[#allocation2 + $0x20] sm:$0xff] %vm301, %v57
          %307 = vst.msk [vmem:[#allocation2 + $0x28] sm:$0xff] %vm301, %v58
          %308 = vst.msk [vmem:[#allocation2 + $0x30] sm:$0xff] %vm301, %v59
          %309 = vst.msk [vmem:[#allocation2 + $0x38] sm:$0xff] %vm301, %v60
        $region40: #{tpu_custom_call.1} parent=19 // pred_fallthru
          _
        %p310 = scmp.eq.s32.totalorder %s47, 1
        // Predicated region
        $region41: #{tpu_custom_call.1} parent=19 // pred_check
          %p311 = pneg %p310
        $region42: #{tpu_custom_call.1} parent=19 // pred_check_branch
          %313 = sbr.rel (%p311) target = $region44
        $region43: #{tpu_custom_call.1} parent=19 // pred_region
          %v314 = vrot.slane %v53, 1
          %v315 = vrot.slane %v55, 1
          %v316 = vrot.slane %v57, 1
          %v317 = vrot.slane %v59, 1
          %v318 = vrot.slane %v54, 1
          %v319 = vrot.slane %v56, 1
          %v320 = vrot.slane %v58, 1
          %v321 = vrot.slane %v60, 1
          %vm322 = vcmp.lt.s32.totalorder %v30, 7
          %v323 = vsel %vm322, %v314, %v318
          %v324 = vsel %vm322, %v315, %v319
          %v325 = vsel %vm322, %v316, %v320
          %v326 = vsel %vm322, %v317, %v321
          %v327 = vsel %vm322, %v318, %v314
          %v328 = vsel %vm322, %v319, %v315
          %v329 = vsel %vm322, %v320, %v316
          %v330 = vsel %vm322, %v321, %v317
          %vm331 = vcmp.ge.s32.totalorder %v30, 15
          %vm332 = vcmp.ge.s32.totalorder %v31, 15
          %v333 = vsel %vm331, 1, 0
          %v334 = vsel %vm332, 1, 0
          %vm335 = vcmp.eq.s32.totalorder %v333, 1
          %vm336 = vcmp.eq.s32.totalorder %v334, 1
          %v337 = vlaneseq
          %v338 = vshrl.u32 %v337, 7
          %v339 = vsub.s32 7, %v338
          %v340 = vrot.slane %v54, %v339
          %v341 = vlaneseq
          %v342 = vshrl.u32 %v341, 7
          %v343 = vsub.s32 7, %v342
          %v344 = vrot.slane %v56, %v343
          %v345 = vlaneseq
          %v346 = vshrl.u32 %v345, 7
          %v347 = vsub.s32 7, %v346
          %v348 = vrot.slane %v58, %v347
          %v349 = vlaneseq
          %v350 = vshrl.u32 %v349, 7
          %v351 = vsub.s32 7, %v350
          %v352 = vrot.slane %v60, %v351
          %v353 = vsel %vm335, %v340, %v323
          %v354 = vsel %vm336, %v340, %v327
          %v355 = vsel %vm335, %v344, %v324
          %v356 = vsel %vm336, %v344, %v328
          %v357 = vsel %vm335, %v348, %v325
          %v358 = vsel %vm336, %v348, %v329
          %v359 = vsel %vm335, %v352, %v326
          %v360 = vsel %vm336, %v352, %v330
          %vm361 = vcmask 130048
          %362 = vst.msk [vmem:[#allocation2] sm:$0xff] %vm361, %v353
          %363 = vst.msk [vmem:[#allocation2 + $0x8] sm:$0xff] %vm361, %v354
          %364 = vst.msk [vmem:[#allocation2 + $0x10] sm:$0xff] %vm361, %v355
          %365 = vst.msk [vmem:[#allocation2 + $0x18] sm:$0xff] %vm361, %v356
          %366 = vst.msk [vmem:[#allocation2 + $0x20] sm:$0xff] %vm361, %v357
          %367 = vst.msk [vmem:[#allocation2 + $0x28] sm:$0xff] %vm361, %v358
          %368 = vst.msk [vmem:[#allocation2 + $0x30] sm:$0xff] %vm361, %v359
          %369 = vst.msk [vmem:[#allocation2 + $0x38] sm:$0xff] %vm361, %v360
        $region44: #{tpu_custom_call.1} parent=19 // pred_fallthru
          _
        %p370 = scmp.eq.s32.totalorder %s47, 2
        // Predicated region
        $region45: #{tpu_custom_call.1} parent=19 // pred_check
          %p371 = pneg %p370
        $region46: #{tpu_custom_call.1} parent=19 // pred_check_branch
          %373 = sbr.rel (%p371) target = $region48
        $region47: #{tpu_custom_call.1} parent=19 // pred_region
          %v374 = vrot.slane %v53, 2
          %v375 = vrot.slane %v55, 2
          %v376 = vrot.slane %v57, 2
          %v377 = vrot.slane %v59, 2
          %v378 = vrot.slane %v54, 2
          %v379 = vrot.slane %v56, 2
          %v380 = vrot.slane %v58, 2
          %v381 = vrot.slane %v60, 2
          %vm382 = vcmp.lt.s32.totalorder %v30, 6
          %v383 = vsel %vm382, %v374, %v378
          %v384 = vsel %vm382, %v375, %v379
          %v385 = vsel %vm382, %v376, %v380
          %v386 = vsel %vm382, %v377, %v381
          %v387 = vsel %vm382, %v378, %v374
          %v388 = vsel %vm382, %v379, %v375
          %v389 = vsel %vm382, %v380, %v376
          %v390 = vsel %vm382, %v381, %v377
          %vm391 = vcmp.ge.s32.totalorder %v30, 14
          %vm392 = vcmp.ge.s32.totalorder %v31, 14
          %v393 = vsel %vm391, 1, 0
          %v394 = vsel %vm392, 1, 0
          %vm395 = vcmp.eq.s32.totalorder %v393, 1
          %vm396 = vcmp.eq.s32.totalorder %v394, 1
          %v397 = vlaneseq
          %v398 = vshrl.u32 %v397, 7
          %v399 = vsub.s32 7, %v398
          %v400 = vrot.slane %v54, %v399
          %v401 = vlaneseq
          %v402 = vshrl.u32 %v401, 7
          %v403 = vsub.s32 7, %v402
          %v404 = vrot.slane %v56, %v403
          %v405 = vlaneseq
          %v406 = vshrl.u32 %v405, 7
          %v407 = vsub.s32 7, %v406
          %v408 = vrot.slane %v58, %v407
          %v409 = vlaneseq
          %v410 = vshrl.u32 %v409, 7
          %v411 = vsub.s32 7, %v410
          %v412 = vrot.slane %v60, %v411
          %v413 = vsel %vm395, %v400, %v383
          %v414 = vsel %vm396, %v400, %v387
          %v415 = vsel %vm395, %v404, %v384
          %v416 = vsel %vm396, %v404, %v388
          %v417 = vsel %vm395, %v408, %v385
          %v418 = vsel %vm396, %v408, %v389
          %v419 = vsel %vm395, %v412, %v386
          %v420 = vsel %vm396, %v412, %v390
          %vm421 = vcmask 130048
          %422 = vst.msk [vmem:[#allocation2] sm:$0xff] %vm421, %v413
          %423 = vst.msk [vmem:[#allocation2 + $0x8] sm:$0xff] %vm421, %v414
          %424 = vst.msk [vmem:[#allocation2 + $0x10] sm:$0xff] %vm421, %v415
          %425 = vst.msk [vmem:[#allocation2 + $0x18] sm:$0xff] %vm421, %v416
          %426 = vst.msk [vmem:[#allocation2 + $0x20] sm:$0xff] %vm421, %v417
          %427 = vst.msk [vmem:[#allocation2 + $0x28] sm:$0xff] %vm421, %v418
          %428 = vst.msk [vmem:[#allocation2 + $0x30] sm:$0xff] %vm421, %v419
          %429 = vst.msk [vmem:[#allocation2 + $0x38] sm:$0xff] %vm421, %v420
        $region48: #{tpu_custom_call.1} parent=19 // pred_fallthru
          _
        %p430 = scmp.eq.s32.totalorder %s47, 3
        // Predicated region
        $region49: #{tpu_custom_call.1} parent=19 // pred_check
          %p431 = pneg %p430
        $region50: #{tpu_custom_call.1} parent=19 // pred_check_branch
          %433 = sbr.rel (%p431) target = $region52
        $region51: #{tpu_custom_call.1} parent=19 // pred_region
          %v434 = vrot.slane %v53, 3
          %v435 = vrot.slane %v55, 3
          %v436 = vrot.slane %v57, 3
          %v437 = vrot.slane %v59, 3
          %v438 = vrot.slane %v54, 3
          %v439 = vrot.slane %v56, 3
          %v440 = vrot.slane %v58, 3
          %v441 = vrot.slane %v60, 3
          %vm442 = vcmp.lt.s32.totalorder %v30, 5
          %v443 = vsel %vm442, %v434, %v438
          %v444 = vsel %vm442, %v435, %v439
          %v445 = vsel %vm442, %v436, %v440
          %v446 = vsel %vm442, %v437, %v441
          %v447 = vsel %vm442, %v438, %v434
          %v448 = vsel %vm442, %v439, %v435
          %v449 = vsel %vm442, %v440, %v436
          %v450 = vsel %vm442, %v441, %v437
          %vm451 = vcmp.ge.s32.totalorder %v30, 13
          %vm452 = vcmp.ge.s32.totalorder %v31, 13
          %v453 = vsel %vm451, 1, 0
          %v454 = vsel %vm452, 1, 0
          %vm455 = vcmp.eq.s32.totalorder %v453, 1
          %vm456 = vcmp.eq.s32.totalorder %v454, 1
          %v457 = vlaneseq
          %v458 = vshrl.u32 %v457, 7
          %v459 = vsub.s32 7, %v458
          %v460 = vrot.slane %v54, %v459
          %v461 = vlaneseq
          %v462 = vshrl.u32 %v461, 7
          %v463 = vsub.s32 7, %v462
          %v464 = vrot.slane %v56, %v463
          %v465 = vlaneseq
          %v466 = vshrl.u32 %v465, 7
          %v467 = vsub.s32 7, %v466
          %v468 = vrot.slane %v58, %v467
          %v469 = vlaneseq
          %v470 = vshrl.u32 %v469, 7
          %v471 = vsub.s32 7, %v470
          %v472 = vrot.slane %v60, %v471
          %v473 = vsel %vm455, %v460, %v443
          %v474 = vsel %vm456, %v460, %v447
          %v475 = vsel %vm455, %v464, %v444
          %v476 = vsel %vm456, %v464, %v448
          %v477 = vsel %vm455, %v468, %v445
          %v478 = vsel %vm456, %v468, %v449
          %v479 = vsel %vm455, %v472, %v446
          %v480 = vsel %vm456, %v472, %v450
          %vm481 = vcmask 130048
          %482 = vst.msk [vmem:[#allocation2] sm:$0xff] %vm481, %v473
          %483 = vst.msk [vmem:[#allocation2 + $0x8] sm:$0xff] %vm481, %v474
          %484 = vst.msk [vmem:[#allocation2 + $0x10] sm:$0xff] %vm481, %v475
          %485 = vst.msk [vmem:[#allocation2 + $0x18] sm:$0xff] %vm481, %v476
          %486 = vst.msk [vmem:[#allocation2 + $0x20] sm:$0xff] %vm481, %v477
          %487 = vst.msk [vmem:[#allocation2 + $0x28] sm:$0xff] %vm481, %v478
          %488 = vst.msk [vmem:[#allocation2 + $0x30] sm:$0xff] %vm481, %v479
          %489 = vst.msk [vmem:[#allocation2 + $0x38] sm:$0xff] %vm481, %v480
        $region52: #{tpu_custom_call.1} parent=19 // pred_fallthru
          _
        %p490 = scmp.eq.s32.totalorder %s47, 4
        // Predicated region
        $region53: #{tpu_custom_call.1} parent=19 // pred_check
          %p491 = pneg %p490
        $region54: #{tpu_custom_call.1} parent=19 // pred_check_branch
          %493 = sbr.rel (%p491) target = $region56
        $region55: #{tpu_custom_call.1} parent=19 // pred_region
          %v494 = vrot.slane %v53, 4
          %v495 = vrot.slane %v55, 4
          %v496 = vrot.slane %v57, 4
          %v497 = vrot.slane %v59, 4
          %v498 = vrot.slane %v54, 4
          %v499 = vrot.slane %v56, 4
          %v500 = vrot.slane %v58, 4
          %v501 = vrot.slane %v60, 4
          %vm502 = vcmp.lt.s32.totalorder %v30, 4
          %v503 = vsel %vm502, %v494, %v498
          %v504 = vsel %vm502, %v495, %v499
          %v505 = vsel %vm502, %v496, %v500
          %v506 = vsel %vm502, %v497, %v501
          %v507 = vsel %vm502, %v498, %v494
          %v508 = vsel %vm502, %v499, %v495
          %v509 = vsel %vm502, %v500, %v496
          %v510 = vsel %vm502, %v501, %v497
          %vm511 = vcmp.ge.s32.totalorder %v30, 12
          %vm512 = vcmp.ge.s32.totalorder %v31, 12
          %v513 = vsel %vm511, 1, 0
          %v514 = vsel %vm512, 1, 0
          %vm515 = vcmp.eq.s32.totalorder %v513, 1
          %vm516 = vcmp.eq.s32.totalorder %v514, 1
          %v517 = vlaneseq
          %v518 = vshrl.u32 %v517, 7
          %v519 = vsub.s32 7, %v518
          %v520 = vrot.slane %v54, %v519
          %v521 = vlaneseq
          %v522 = vshrl.u32 %v521, 7
          %v523 = vsub.s32 7, %v522
          %v524 = vrot.slane %v56, %v523
          %v525 = vlaneseq
          %v526 = vshrl.u32 %v525, 7
          %v527 = vsub.s32 7, %v526
          %v528 = vrot.slane %v58, %v527
          %v529 = vlaneseq
          %v530 = vshrl.u32 %v529, 7
          %v531 = vsub.s32 7, %v530
          %v532 = vrot.slane %v60, %v531
          %v533 = vsel %vm515, %v520, %v503
          %v534 = vsel %vm516, %v520, %v507
          %v535 = vsel %vm515, %v524, %v504
          %v536 = vsel %vm516, %v524, %v508
          %v537 = vsel %vm515, %v528, %v505
          %v538 = vsel %vm516, %v528, %v509
          %v539 = vsel %vm515, %v532, %v506
          %v540 = vsel %vm516, %v532, %v510
          %vm541 = vcmask 130048
          %542 = vst.msk [vmem:[#allocation2] sm:$0xff] %vm541, %v533
          %543 = vst.msk [vmem:[#allocation2 + $0x8] sm:$0xff] %vm541, %v534
          %544 = vst.msk [vmem:[#allocation2 + $0x10] sm:$0xff] %vm541, %v535
          %545 = vst.msk [vmem:[#allocation2 + $0x18] sm:$0xff] %vm541, %v536
          %546 = vst.msk [vmem:[#allocation2 + $0x20] sm:$0xff] %vm541, %v537
          %547 = vst.msk [vmem:[#allocation2 + $0x28] sm:$0xff] %vm541, %v538
          %548 = vst.msk [vmem:[#allocation2 + $0x30] sm:$0xff] %vm541, %v539
          %549 = vst.msk [vmem:[#allocation2 + $0x38] sm:$0xff] %vm541, %v540
        $region56: #{tpu_custom_call.1} parent=19 // pred_fallthru
          _
        %v550 = vld [vmem:[#allocation2] sm:$0xff]
        %v551 = vld [vmem:[#allocation2 + $0x8] sm:$0xff]
        %v552 = vld [vmem:[#allocation2 + $0x10] sm:$0xff]
        %v553 = vld [vmem:[#allocation2 + $0x18] sm:$0xff]
        %v554 = vld [vmem:[#allocation2 + $0x20] sm:$0xff]
        %v555 = vld [vmem:[#allocation2 + $0x28] sm:$0xff]
        %v556 = vld [vmem:[#allocation2 + $0x30] sm:$0xff]
        %v557 = vld [vmem:[#allocation2 + $0x38] sm:$0xff]
        %p558 = scmp.eq.s32.totalorder %s50, 4294967292
        // Predicated region
        $region57: #{tpu_custom_call.1} parent=19 // pred_check
          %p559 = pneg %p558
        $region58: #{tpu_custom_call.1} parent=19 // pred_check_branch
          %561 = sbr.rel (%p559) target = $region60
        $region59: #{tpu_custom_call.1} parent=19 // pred_region
          %vm562 = vcmask 1047680
          %563 = vrot.lane.b32.xlu0 %v550, 16
          %v564 = vpop.permute.xlu0 %563
          %v565 = vsel %vm562, %v564, %v550
          %566 = vrot.lane.b32.xlu0 %v551, 16
          %v567 = vpop.permute.xlu0 %566
          %v568 = vsel %vm562, %v567, %v551
          %569 = vrot.lane.b32.xlu0 %v552, 16
          %v570 = vpop.permute.xlu0 %569
          %v571 = vsel %vm562, %v570, %v552
          %572 = vrot.lane.b32.xlu0 %v553, 16
          %v573 = vpop.permute.xlu0 %572
          %v574 = vsel %vm562, %v573, %v553
          %575 = vrot.lane.b32.xlu0 %v554, 16
          %v576 = vpop.permute.xlu0 %575
          %v577 = vsel %vm562, %v576, %v554
          %578 = vrot.lane.b32.xlu0 %v555, 16
          %v579 = vpop.permute.xlu0 %578
          %v580 = vsel %vm562, %v579, %v555
          %581 = vrot.lane.b32.xlu0 %v556, 16
          %v582 = vpop.permute.xlu0 %581
          %v583 = vsel %vm562, %v582, %v556
          %584 = vrot.lane.b32.xlu0 %v557, 16
          %v585 = vpop.permute.xlu0 %584
          %v586 = vsel %vm562, %v585, %v557
          %587 = vrot.lane.b32.xlu0 %v565, 16
          %v588 = vpop.permute.xlu0 %587
          %589 = vrot.lane.b32.xlu0 %v568, 16
          %v590 = vpop.permute.xlu0 %589
          %591 = vrot.lane.b32.xlu0 %v571, 16
          %v592 = vpop.permute.xlu0 %591
          %593 = vrot.lane.b32.xlu0 %v574, 16
          %v594 = vpop.permute.xlu0 %593
          %595 = vrot.lane.b32.xlu0 %v577, 16
          %v596 = vpop.permute.xlu0 %595
          %597 = vrot.lane.b32.xlu0 %v580, 16
          %v598 = vpop.permute.xlu0 %597
          %599 = vrot.lane.b32.xlu0 %v583, 16
          %v600 = vpop.permute.xlu0 %599
          %601 = vrot.lane.b32.xlu0 %v586, 16
          %v602 = vpop.permute.xlu0 %601
          %v603 = vsel %vm562, %v588, %v550
          %v604 = vsel %vm562, %v590, %v551
          %v605 = vsel %vm562, %v592, %v552
          %v606 = vsel %vm562, %v594, %v553
          %v607 = vsel %vm562, %v596, %v554
          %v608 = vsel %vm562, %v598, %v555
          %v609 = vsel %vm562, %v600, %v556
          %v610 = vsel %vm562, %v602, %v557
          %vm611 = vcmp.lt.s32.totalorder %v33, 4
          %v612 = vsel %vm611, 1, 0
          %vm613 = vcmp.eq.s32.totalorder %v612, 1
          %615 = vset.pattern.permute.xlu0 0
          %616 = vperm.xlu0 %615, %v550
          %v617 = vpop.permute.xlu0 %616
          %620 = vset.pattern.permute.xlu0 0
          %621 = vperm.xlu0 %620, %v551
          %v622 = vpop.permute.xlu0 %621
          %625 = vset.pattern.permute.xlu0 0
          %626 = vperm.xlu0 %625, %v552
          %v627 = vpop.permute.xlu0 %626
          %630 = vset.pattern.permute.xlu0 0
          %631 = vperm.xlu0 %630, %v553
          %v632 = vpop.permute.xlu0 %631
          %635 = vset.pattern.permute.xlu0 0
          %636 = vperm.xlu0 %635, %v554
          %v637 = vpop.permute.xlu0 %636
          %640 = vset.pattern.permute.xlu0 0
          %641 = vperm.xlu0 %640, %v555
          %v642 = vpop.permute.xlu0 %641
          %645 = vset.pattern.permute.xlu0 0
          %646 = vperm.xlu0 %645, %v556
          %v647 = vpop.permute.xlu0 %646
          %650 = vset.pattern.permute.xlu0 0
          %651 = vperm.xlu0 %650, %v557
          %v652 = vpop.permute.xlu0 %651
          %662 = vrot.lane.b32.xlu0 %v603, 116
          %v663 = vpop.permute.xlu0 %662
          %664 = vrot.lane.b32.xlu0 %v604, 116
          %v665 = vpop.permute.xlu0 %664
          %666 = vrot.lane.b32.xlu0 %v605, 116
          %v667 = vpop.permute.xlu0 %666
          %668 = vrot.lane.b32.xlu0 %v606, 116
          %v669 = vpop.permute.xlu0 %668
          %670 = vrot.lane.b32.xlu0 %v607, 116
          %v671 = vpop.permute.xlu0 %670
          %672 = vrot.lane.b32.xlu0 %v608, 116
          %v673 = vpop.permute.xlu0 %672
          %674 = vrot.lane.b32.xlu0 %v609, 116
          %v675 = vpop.permute.xlu0 %674
          %676 = vrot.lane.b32.xlu0 %v610, 116
          %v677 = vpop.permute.xlu0 %676
          %v686 = vsel %vm613, %v617, %v663
          %v687 = vsel %vm613, %v622, %v665
          %v688 = vsel %vm613, %v627, %v667
          %v689 = vsel %vm613, %v632, %v669
          %v690 = vsel %vm613, %v637, %v671
          %v691 = vsel %vm613, %v642, %v673
          %v692 = vsel %vm613, %v647, %v675
          %v693 = vsel %vm613, %v652, %v677
          %s694 = scalar_lea.vmem [#allocation8], %s51
          %vm695 = vcmask 130048
          %696 = vst.msk [vmem:[%s694] sm:$0xff] %vm695, %v686
          %697 = vst.msk [vmem:[%s694 + $0x8] sm:$0xff] %vm695, %v687
          %698 = vst.msk [vmem:[%s694 + $0x10] sm:$0xff] %vm695, %v688
          %699 = vst.msk [vmem:[%s694 + $0x18] sm:$0xff] %vm695, %v689
          %700 = vst.msk [vmem:[%s694 + $0x20] sm:$0xff] %vm695, %v690
          %701 = vst.msk [vmem:[%s694 + $0x28] sm:$0xff] %vm695, %v691
          %702 = vst.msk [vmem:[%s694 + $0x30] sm:$0xff] %vm695, %v692
          %703 = vst.msk [vmem:[%s694 + $0x38] sm:$0xff] %vm695, %v693
        $region60: #{tpu_custom_call.1} parent=19 // pred_fallthru
          _
        %p704 = scmp.eq.s32.totalorder %s50, 4294967293
        // Predicated region
        $region61: #{tpu_custom_call.1} parent=19 // pred_check
          %p705 = pneg %p704
        $region62: #{tpu_custom_call.1} parent=19 // pred_check_branch
          %707 = sbr.rel (%p705) target = $region64
        $region63: #{tpu_custom_call.1} parent=19 // pred_region
          %vm708 = vcmask 1047680
          %709 = vrot.lane.b32.xlu0 %v550, 16
          %v710 = vpop.permute.xlu0 %709
          %v711 = vsel %vm708, %v710, %v550
          %712 = vrot.lane.b32.xlu0 %v551, 16
          %v713 = vpop.permute.xlu0 %712
          %v714 = vsel %vm708, %v713, %v551
          %715 = vrot.lane.b32.xlu0 %v552, 16
          %v716 = vpop.permute.xlu0 %715
          %v717 = vsel %vm708, %v716, %v552
          %718 = vrot.lane.b32.xlu0 %v553, 16
          %v719 = vpop.permute.xlu0 %718
          %v720 = vsel %vm708, %v719, %v553
          %721 = vrot.lane.b32.xlu0 %v554, 16
          %v722 = vpop.permute.xlu0 %721
          %v723 = vsel %vm708, %v722, %v554
          %724 = vrot.lane.b32.xlu0 %v555, 16
          %v725 = vpop.permute.xlu0 %724
          %v726 = vsel %vm708, %v725, %v555
          %727 = vrot.lane.b32.xlu0 %v556, 16
          %v728 = vpop.permute.xlu0 %727
          %v729 = vsel %vm708, %v728, %v556
          %730 = vrot.lane.b32.xlu0 %v557, 16
          %v731 = vpop.permute.xlu0 %730
          %v732 = vsel %vm708, %v731, %v557
          %733 = vrot.lane.b32.xlu0 %v711, 16
          %v734 = vpop.permute.xlu0 %733
          %735 = vrot.lane.b32.xlu0 %v714, 16
          %v736 = vpop.permute.xlu0 %735
          %737 = vrot.lane.b32.xlu0 %v717, 16
          %v738 = vpop.permute.xlu0 %737
          %739 = vrot.lane.b32.xlu0 %v720, 16
          %v740 = vpop.permute.xlu0 %739
          %741 = vrot.lane.b32.xlu0 %v723, 16
          %v742 = vpop.permute.xlu0 %741
          %743 = vrot.lane.b32.xlu0 %v726, 16
          %v744 = vpop.permute.xlu0 %743
          %745 = vrot.lane.b32.xlu0 %v729, 16
          %v746 = vpop.permute.xlu0 %745
          %747 = vrot.lane.b32.xlu0 %v732, 16
          %v748 = vpop.permute.xlu0 %747
          %v749 = vsel %vm708, %v734, %v550
          %v750 = vsel %vm708, %v736, %v551
          %v751 = vsel %vm708, %v738, %v552
          %v752 = vsel %vm708, %v740, %v553
          %v753 = vsel %vm708, %v742, %v554
          %v754 = vsel %vm708, %v744, %v555
          %v755 = vsel %vm708, %v746, %v556
          %v756 = vsel %vm708, %v748, %v557
          %vm757 = vcmp.lt.s32.totalorder %v33, 3
          %v758 = vsel %vm757, 1, 0
          %vm759 = vcmp.eq.s32.totalorder %v758, 1
          %761 = vset.pattern.permute.xlu0 0
          %762 = vperm.xlu0 %761, %v550
          %v763 = vpop.permute.xlu0 %762
          %766 = vset.pattern.permute.xlu0 0
          %767 = vperm.xlu0 %766, %v551
          %v768 = vpop.permute.xlu0 %767
          %771 = vset.pattern.permute.xlu0 0
          %772 = vperm.xlu0 %771, %v552
          %v773 = vpop.permute.xlu0 %772
          %776 = vset.pattern.permute.xlu0 0
          %777 = vperm.xlu0 %776, %v553
          %v778 = vpop.permute.xlu0 %777
          %781 = vset.pattern.permute.xlu0 0
          %782 = vperm.xlu0 %781, %v554
          %v783 = vpop.permute.xlu0 %782
          %786 = vset.pattern.permute.xlu0 0
          %787 = vperm.xlu0 %786, %v555
          %v788 = vpop.permute.xlu0 %787
          %791 = vset.pattern.permute.xlu0 0
          %792 = vperm.xlu0 %791, %v556
          %v793 = vpop.permute.xlu0 %792
          %796 = vset.pattern.permute.xlu0 0
          %797 = vperm.xlu0 %796, %v557
          %v798 = vpop.permute.xlu0 %797
          %808 = vrot.lane.b32.xlu0 %v749, 115
          %v809 = vpop.permute.xlu0 %808
          %810 = vrot.lane.b32.xlu0 %v750, 115
          %v811 = vpop.permute.xlu0 %810
          %812 = vrot.lane.b32.xlu0 %v751, 115
          %v813 = vpop.permute.xlu0 %812
          %814 = vrot.lane.b32.xlu0 %v752, 115
          %v815 = vpop.permute.xlu0 %814
          %816 = vrot.lane.b32.xlu0 %v753, 115
          %v817 = vpop.permute.xlu0 %816
          %818 = vrot.lane.b32.xlu0 %v754, 115
          %v819 = vpop.permute.xlu0 %818
          %820 = vrot.lane.b32.xlu0 %v755, 115
          %v821 = vpop.permute.xlu0 %820
          %822 = vrot.lane.b32.xlu0 %v756, 115
          %v823 = vpop.permute.xlu0 %822
          %v832 = vsel %vm759, %v763, %v809
          %v833 = vsel %vm759, %v768, %v811
          %v834 = vsel %vm759, %v773, %v813
          %v835 = vsel %vm759, %v778, %v815
          %v836 = vsel %vm759, %v783, %v817
          %v837 = vsel %vm759, %v788, %v819
          %v838 = vsel %vm759, %v793, %v821
          %v839 = vsel %vm759, %v798, %v823
          %s840 = scalar_lea.vmem [#allocation8], %s51
          %vm841 = vcmask 130048
          %842 = vst.msk [vmem:[%s840] sm:$0xff] %vm841, %v832
          %843 = vst.msk [vmem:[%s840 + $0x8] sm:$0xff] %vm841, %v833
          %844 = vst.msk [vmem:[%s840 + $0x10] sm:$0xff] %vm841, %v834
          %845 = vst.msk [vmem:[%s840 + $0x18] sm:$0xff] %vm841, %v835
          %846 = vst.msk [vmem:[%s840 + $0x20] sm:$0xff] %vm841, %v836
          %847 = vst.msk [vmem:[%s840 + $0x28] sm:$0xff] %vm841, %v837
          %848 = vst.msk [vmem:[%s840 + $0x30] sm:$0xff] %vm841, %v838
          %849 = vst.msk [vmem:[%s840 + $0x38] sm:$0xff] %vm841, %v839
        $region64: #{tpu_custom_call.1} parent=19 // pred_fallthru
          _
        %p850 = scmp.eq.s32.totalorder %s50, 4294967294
        // Predicated region
        $region65: #{tpu_custom_call.1} parent=19 // pred_check
          %p851 = pneg %p850
        $region66: #{tpu_custom_call.1} parent=19 // pred_check_branch
          %853 = sbr.rel (%p851) target = $region68
        $region67: #{tpu_custom_call.1} parent=19 // pred_region
          %vm854 = vcmask 1047680
          %855 = vrot.lane.b32.xlu0 %v550, 16
          %v856 = vpop.permute.xlu0 %855
          %v857 = vsel %vm854, %v856, %v550
          %858 = vrot.lane.b32.xlu0 %v551, 16
          %v859 = vpop.permute.xlu0 %858
          %v860 = vsel %vm854, %v859, %v551
          %861 = vrot.lane.b32.xlu0 %v552, 16
          %v862 = vpop.permute.xlu0 %861
          %v863 = vsel %vm854, %v862, %v552
          %864 = vrot.lane.b32.xlu0 %v553, 16
          %v865 = vpop.permute.xlu0 %864
          %v866 = vsel %vm854, %v865, %v553
          %867 = vrot.lane.b32.xlu0 %v554, 16
          %v868 = vpop.permute.xlu0 %867
          %v869 = vsel %vm854, %v868, %v554
          %870 = vrot.lane.b32.xlu0 %v555, 16
          %v871 = vpop.permute.xlu0 %870
          %v872 = vsel %vm854, %v871, %v555
          %873 = vrot.lane.b32.xlu0 %v556, 16
          %v874 = vpop.permute.xlu0 %873
          %v875 = vsel %vm854, %v874, %v556
          %876 = vrot.lane.b32.xlu0 %v557, 16
          %v877 = vpop.permute.xlu0 %876
          %v878 = vsel %vm854, %v877, %v557
          %879 = vrot.lane.b32.xlu0 %v857, 16
          %v880 = vpop.permute.xlu0 %879
          %881 = vrot.lane.b32.xlu0 %v860, 16
          %v882 = vpop.permute.xlu0 %881
          %883 = vrot.lane.b32.xlu0 %v863, 16
          %v884 = vpop.permute.xlu0 %883
          %885 = vrot.lane.b32.xlu0 %v866, 16
          %v886 = vpop.permute.xlu0 %885
          %887 = vrot.lane.b32.xlu0 %v869, 16
          %v888 = vpop.permute.xlu0 %887
          %889 = vrot.lane.b32.xlu0 %v872, 16
          %v890 = vpop.permute.xlu0 %889
          %891 = vrot.lane.b32.xlu0 %v875, 16
          %v892 = vpop.permute.xlu0 %891
          %893 = vrot.lane.b32.xlu0 %v878, 16
          %v894 = vpop.permute.xlu0 %893
          %v895 = vsel %vm854, %v880, %v550
          %v896 = vsel %vm854, %v882, %v551
          %v897 = vsel %vm854, %v884, %v552
          %v898 = vsel %vm854, %v886, %v553
          %v899 = vsel %vm854, %v888, %v554
          %v900 = vsel %vm854, %v890, %v555
          %v901 = vsel %vm854, %v892, %v556
          %v902 = vsel %vm854, %v894, %v557
          %vm903 = vcmp.lt.s32.totalorder %v33, 2
          %v904 = vsel %vm903, 1, 0
          %vm905 = vcmp.eq.s32.totalorder %v904, 1
          %907 = vset.pattern.permute.xlu0 0
          %908 = vperm.xlu0 %907, %v550
          %v909 = vpop.permute.xlu0 %908
          %912 = vset.pattern.permute.xlu0 0
          %913 = vperm.xlu0 %912, %v551
          %v914 = vpop.permute.xlu0 %913
          %917 = vset.pattern.permute.xlu0 0
          %918 = vperm.xlu0 %917, %v552
          %v919 = vpop.permute.xlu0 %918
          %922 = vset.pattern.permute.xlu0 0
          %923 = vperm.xlu0 %922, %v553
          %v924 = vpop.permute.xlu0 %923
          %927 = vset.pattern.permute.xlu0 0
          %928 = vperm.xlu0 %927, %v554
          %v929 = vpop.permute.xlu0 %928
          %932 = vset.pattern.permute.xlu0 0
          %933 = vperm.xlu0 %932, %v555
          %v934 = vpop.permute.xlu0 %933
          %937 = vset.pattern.permute.xlu0 0
          %938 = vperm.xlu0 %937, %v556
          %v939 = vpop.permute.xlu0 %938
          %942 = vset.pattern.permute.xlu0 0
          %943 = vperm.xlu0 %942, %v557
          %v944 = vpop.permute.xlu0 %943
          %954 = vrot.lane.b32.xlu0 %v895, 114
          %v955 = vpop.permute.xlu0 %954
          %956 = vrot.lane.b32.xlu0 %v896, 114
          %v957 = vpop.permute.xlu0 %956
          %958 = vrot.lane.b32.xlu0 %v897, 114
          %v959 = vpop.permute.xlu0 %958
          %960 = vrot.lane.b32.xlu0 %v898, 114
          %v961 = vpop.permute.xlu0 %960
          %962 = vrot.lane.b32.xlu0 %v899, 114
          %v963 = vpop.permute.xlu0 %962
          %964 = vrot.lane.b32.xlu0 %v900, 114
          %v965 = vpop.permute.xlu0 %964
          %966 = vrot.lane.b32.xlu0 %v901, 114
          %v967 = vpop.permute.xlu0 %966
          %968 = vrot.lane.b32.xlu0 %v902, 114
          %v969 = vpop.permute.xlu0 %968
          %v978 = vsel %vm905, %v909, %v955
          %v979 = vsel %vm905, %v914, %v957
          %v980 = vsel %vm905, %v919, %v959
          %v981 = vsel %vm905, %v924, %v961
          %v982 = vsel %vm905, %v929, %v963
          %v983 = vsel %vm905, %v934, %v965
          %v984 = vsel %vm905, %v939, %v967
          %v985 = vsel %vm905, %v944, %v969
          %s986 = scalar_lea.vmem [#allocation8], %s51
          %vm987 = vcmask 130048
          %988 = vst.msk [vmem:[%s986] sm:$0xff] %vm987, %v978
          %989 = vst.msk [vmem:[%s986 + $0x8] sm:$0xff] %vm987, %v979
          %990 = vst.msk [vmem:[%s986 + $0x10] sm:$0xff] %vm987, %v980
          %991 = vst.msk [vmem:[%s986 + $0x18] sm:$0xff] %vm987, %v981
          %992 = vst.msk [vmem:[%s986 + $0x20] sm:$0xff] %vm987, %v982
          %993 = vst.msk [vmem:[%s986 + $0x28] sm:$0xff] %vm987, %v983
          %994 = vst.msk [vmem:[%s986 + $0x30] sm:$0xff] %vm987, %v984
          %995 = vst.msk [vmem:[%s986 + $0x38] sm:$0xff] %vm987, %v985
        $region68: #{tpu_custom_call.1} parent=19 // pred_fallthru
          _
        %p996 = scmp.eq.s32.totalorder %s50, 4294967295
        // Predicated region
        $region69: #{tpu_custom_call.1} parent=19 // pred_check
          %p997 = pneg %p996
        $region70: #{tpu_custom_call.1} parent=19 // pred_check_branch
          %999 = sbr.rel (%p997) target = $region72
        $region71: #{tpu_custom_call.1} parent=19 // pred_region
          %vm1000 = vcmask 1047680
          %1001 = vrot.lane.b32.xlu0 %v550, 16
          %v1002 = vpop.permute.xlu0 %1001
          %v1003 = vsel %vm1000, %v1002, %v550
          %1004 = vrot.lane.b32.xlu0 %v551, 16
          %v1005 = vpop.permute.xlu0 %1004
          %v1006 = vsel %vm1000, %v1005, %v551
          %1007 = vrot.lane.b32.xlu0 %v552, 16
          %v1008 = vpop.permute.xlu0 %1007
          %v1009 = vsel %vm1000, %v1008, %v552
          %1010 = vrot.lane.b32.xlu0 %v553, 16
          %v1011 = vpop.permute.xlu0 %1010
          %v1012 = vsel %vm1000, %v1011, %v553
          %1013 = vrot.lane.b32.xlu0 %v554, 16
          %v1014 = vpop.permute.xlu0 %1013
          %v1015 = vsel %vm1000, %v1014, %v554
          %1016 = vrot.lane.b32.xlu0 %v555, 16
          %v1017 = vpop.permute.xlu0 %1016
          %v1018 = vsel %vm1000, %v1017, %v555
          %1019 = vrot.lane.b32.xlu0 %v556, 16
          %v1020 = vpop.permute.xlu0 %1019
          %v1021 = vsel %vm1000, %v1020, %v556
          %1022 = vrot.lane.b32.xlu0 %v557, 16
          %v1023 = vpop.permute.xlu0 %1022
          %v1024 = vsel %vm1000, %v1023, %v557
          %1025 = vrot.lane.b32.xlu0 %v1003, 16
          %v1026 = vpop.permute.xlu0 %1025
          %1027 = vrot.lane.b32.xlu0 %v1006, 16
          %v1028 = vpop.permute.xlu0 %1027
          %1029 = vrot.lane.b32.xlu0 %v1009, 16
          %v1030 = vpop.permute.xlu0 %1029
          %1031 = vrot.lane.b32.xlu0 %v1012, 16
          %v1032 = vpop.permute.xlu0 %1031
          %1033 = vrot.lane.b32.xlu0 %v1015, 16
          %v1034 = vpop.permute.xlu0 %1033
          %1035 = vrot.lane.b32.xlu0 %v1018, 16
          %v1036 = vpop.permute.xlu0 %1035
          %1037 = vrot.lane.b32.xlu0 %v1021, 16
          %v1038 = vpop.permute.xlu0 %1037
          %1039 = vrot.lane.b32.xlu0 %v1024, 16
          %v1040 = vpop.permute.xlu0 %1039
          %v1041 = vsel %vm1000, %v1026, %v550
          %v1042 = vsel %vm1000, %v1028, %v551
          %v1043 = vsel %vm1000, %v1030, %v552
          %v1044 = vsel %vm1000, %v1032, %v553
          %v1045 = vsel %vm1000, %v1034, %v554
          %v1046 = vsel %vm1000, %v1036, %v555
          %v1047 = vsel %vm1000, %v1038, %v556
          %v1048 = vsel %vm1000, %v1040, %v557
          %vm1049 = vcmp.lt.s32.totalorder %v33, 1
          %v1050 = vsel %vm1049, 1, 0
          %vm1051 = vcmp.eq.s32.totalorder %v1050, 1
          %1053 = vset.pattern.permute.xlu0 0
          %1054 = vperm.xlu0 %1053, %v550
          %v1055 = vpop.permute.xlu0 %1054
          %1058 = vset.pattern.permute.xlu0 0
          %1059 = vperm.xlu0 %1058, %v551
          %v1060 = vpop.permute.xlu0 %1059
          %1063 = vset.pattern.permute.xlu0 0
          %1064 = vperm.xlu0 %1063, %v552
          %v1065 = vpop.permute.xlu0 %1064
          %1068 = vset.pattern.permute.xlu0 0
          %1069 = vperm.xlu0 %1068, %v553
          %v1070 = vpop.permute.xlu0 %1069
          %1073 = vset.pattern.permute.xlu0 0
          %1074 = vperm.xlu0 %1073, %v554
          %v1075 = vpop.permute.xlu0 %1074
          %1078 = vset.pattern.permute.xlu0 0
          %1079 = vperm.xlu0 %1078, %v555
          %v1080 = vpop.permute.xlu0 %1079
          %1083 = vset.pattern.permute.xlu0 0
          %1084 = vperm.xlu0 %1083, %v556
          %v1085 = vpop.permute.xlu0 %1084
          %1088 = vset.pattern.permute.xlu0 0
          %1089 = vperm.xlu0 %1088, %v557
          %v1090 = vpop.permute.xlu0 %1089
          %1100 = vrot.lane.b32.xlu0 %v1041, 113
          %v1101 = vpop.permute.xlu0 %1100
          %1102 = vrot.lane.b32.xlu0 %v1042, 113
          %v1103 = vpop.permute.xlu0 %1102
          %1104 = vrot.lane.b32.xlu0 %v1043, 113
          %v1105 = vpop.permute.xlu0 %1104
          %1106 = vrot.lane.b32.xlu0 %v1044, 113
          %v1107 = vpop.permute.xlu0 %1106
          %1108 = vrot.lane.b32.xlu0 %v1045, 113
          %v1109 = vpop.permute.xlu0 %1108
          %1110 = vrot.lane.b32.xlu0 %v1046, 113
          %v1111 = vpop.permute.xlu0 %1110
          %1112 = vrot.lane.b32.xlu0 %v1047, 113
          %v1113 = vpop.permute.xlu0 %1112
          %1114 = vrot.lane.b32.xlu0 %v1048, 113
          %v1115 = vpop.permute.xlu0 %1114
          %v1124 = vsel %vm1051, %v1055, %v1101
          %v1125 = vsel %vm1051, %v1060, %v1103
          %v1126 = vsel %vm1051, %v1065, %v1105
          %v1127 = vsel %vm1051, %v1070, %v1107
          %v1128 = vsel %vm1051, %v1075, %v1109
          %v1129 = vsel %vm1051, %v1080, %v1111
          %v1130 = vsel %vm1051, %v1085, %v1113
          %v1131 = vsel %vm1051, %v1090, %v1115
          %s1132 = scalar_lea.vmem [#allocation8], %s51
          %vm1133 = vcmask 130048
          %1134 = vst.msk [vmem:[%s1132] sm:$0xff] %vm1133, %v1124
          %1135 = vst.msk [vmem:[%s1132 + $0x8] sm:$0xff] %vm1133, %v1125
          %1136 = vst.msk [vmem:[%s1132 + $0x10] sm:$0xff] %vm1133, %v1126
          %1137 = vst.msk [vmem:[%s1132 + $0x18] sm:$0xff] %vm1133, %v1127
          %1138 = vst.msk [vmem:[%s1132 + $0x20] sm:$0xff] %vm1133, %v1128
          %1139 = vst.msk [vmem:[%s1132 + $0x28] sm:$0xff] %vm1133, %v1129
          %1140 = vst.msk [vmem:[%s1132 + $0x30] sm:$0xff] %vm1133, %v1130
          %1141 = vst.msk [vmem:[%s1132 + $0x38] sm:$0xff] %vm1133, %v1131
        $region72: #{tpu_custom_call.1} parent=19 // pred_fallthru
          _
        %p1142 = scmp.eq.s32.totalorder %s50, 0
        // Predicated region
        $region73: #{tpu_custom_call.1} parent=19 // pred_check
          %p1143 = pneg %p1142
        $region74: #{tpu_custom_call.1} parent=19 // pred_check_branch
          %1145 = sbr.rel (%p1143) target = $region76
        $region75: #{tpu_custom_call.1} parent=19 // pred_region
          %s1146 = scalar_lea.vmem [#allocation8], %s51
          %vm1147 = vcmask 130048
          %1148 = vst.msk [vmem:[%s1146] sm:$0xff] %vm1147, %v550
          %1149 = vst.msk [vmem:[%s1146 + $0x8] sm:$0xff] %vm1147, %v551
          %1150 = vst.msk [vmem:[%s1146 + $0x10] sm:$0xff] %vm1147, %v552
          %1151 = vst.msk [vmem:[%s1146 + $0x18] sm:$0xff] %vm1147, %v553
          %1152 = vst.msk [vmem:[%s1146 + $0x20] sm:$0xff] %vm1147, %v554
          %1153 = vst.msk [vmem:[%s1146 + $0x28] sm:$0xff] %vm1147, %v555
          %1154 = vst.msk [vmem:[%s1146 + $0x30] sm:$0xff] %vm1147, %v556
          %1155 = vst.msk [vmem:[%s1146 + $0x38] sm:$0xff] %vm1147, %v557
        $region76: #{tpu_custom_call.1} parent=19 // pred_fallthru
          _
        %p1156 = scmp.eq.s32.totalorder %s50, 1
        // Predicated region
        $region77: #{tpu_custom_call.1} parent=19 // pred_check
          %p1157 = pneg %p1156
        $region78: #{tpu_custom_call.1} parent=19 // pred_check_branch
          %1159 = sbr.rel (%p1157) target = $region80
        $region79: #{tpu_custom_call.1} parent=19 // pred_region
          %vm1160 = vcmask 1047680
          %1161 = vrot.lane.b32.xlu0 %v550, 16
          %v1162 = vpop.permute.xlu0 %1161
          %v1163 = vsel %vm1160, %v1162, %v550
          %1164 = vrot.lane.b32.xlu0 %v551, 16
          %v1165 = vpop.permute.xlu0 %1164
          %v1166 = vsel %vm1160, %v1165, %v551
          %1167 = vrot.lane.b32.xlu0 %v552, 16
          %v1168 = vpop.permute.xlu0 %1167
          %v1169 = vsel %vm1160, %v1168, %v552
          %1170 = vrot.lane.b32.xlu0 %v553, 16
          %v1171 = vpop.permute.xlu0 %1170
          %v1172 = vsel %vm1160, %v1171, %v553
          %1173 = vrot.lane.b32.xlu0 %v554, 16
          %v1174 = vpop.permute.xlu0 %1173
          %v1175 = vsel %vm1160, %v1174, %v554
          %1176 = vrot.lane.b32.xlu0 %v555, 16
          %v1177 = vpop.permute.xlu0 %1176
          %v1178 = vsel %vm1160, %v1177, %v555
          %1179 = vrot.lane.b32.xlu0 %v556, 16
          %v1180 = vpop.permute.xlu0 %1179
          %v1181 = vsel %vm1160, %v1180, %v556
          %1182 = vrot.lane.b32.xlu0 %v557, 16
          %v1183 = vpop.permute.xlu0 %1182
          %v1184 = vsel %vm1160, %v1183, %v557
          %1185 = vrot.lane.b32.xlu0 %v1163, 16
          %v1186 = vpop.permute.xlu0 %1185
          %1187 = vrot.lane.b32.xlu0 %v1166, 16
          %v1188 = vpop.permute.xlu0 %1187
          %1189 = vrot.lane.b32.xlu0 %v1169, 16
          %v1190 = vpop.permute.xlu0 %1189
          %1191 = vrot.lane.b32.xlu0 %v1172, 16
          %v1192 = vpop.permute.xlu0 %1191
          %1193 = vrot.lane.b32.xlu0 %v1175, 16
          %v1194 = vpop.permute.xlu0 %1193
          %1195 = vrot.lane.b32.xlu0 %v1178, 16
          %v1196 = vpop.permute.xlu0 %1195
          %1197 = vrot.lane.b32.xlu0 %v1181, 16
          %v1198 = vpop.permute.xlu0 %1197
          %1199 = vrot.lane.b32.xlu0 %v1184, 16
          %v1200 = vpop.permute.xlu0 %1199
          %v1201 = vsel %vm1160, %v1186, %v550
          %v1202 = vsel %vm1160, %v1188, %v551
          %v1203 = vsel %vm1160, %v1190, %v552
          %v1204 = vsel %vm1160, %v1192, %v553
          %v1205 = vsel %vm1160, %v1194, %v554
          %v1206 = vsel %vm1160, %v1196, %v555
          %v1207 = vsel %vm1160, %v1198, %v556
          %v1208 = vsel %vm1160, %v1200, %v557
          %vm1209 = vcmp.ge.s32.totalorder %v33, 15
          %v1210 = vsel %vm1209, 1, 0
          %vm1211 = vcmp.eq.s32.totalorder %v1210, 1
          %1213 = vset.pattern.permute.xlu0 15
          %1214 = vperm.xlu0 %1213, %v550
          %v1215 = vpop.permute.xlu0 %1214
          %1218 = vset.pattern.permute.xlu0 15
          %1219 = vperm.xlu0 %1218, %v551
          %v1220 = vpop.permute.xlu0 %1219
          %1223 = vset.pattern.permute.xlu0 15
          %1224 = vperm.xlu0 %1223, %v552
          %v1225 = vpop.permute.xlu0 %1224
          %1228 = vset.pattern.permute.xlu0 15
          %1229 = vperm.xlu0 %1228, %v553
          %v1230 = vpop.permute.xlu0 %1229
          %1233 = vset.pattern.permute.xlu0 15
          %1234 = vperm.xlu0 %1233, %v554
          %v1235 = vpop.permute.xlu0 %1234
          %1238 = vset.pattern.permute.xlu0 15
          %1239 = vperm.xlu0 %1238, %v555
          %v1240 = vpop.permute.xlu0 %1239
          %1243 = vset.pattern.permute.xlu0 15
          %1244 = vperm.xlu0 %1243, %v556
          %v1245 = vpop.permute.xlu0 %1244
          %1248 = vset.pattern.permute.xlu0 15
          %1249 = vperm.xlu0 %1248, %v557
          %v1250 = vpop.permute.xlu0 %1249
          %1260 = vrot.lane.b32.xlu0 %v1201, 127
          %v1261 = vpop.permute.xlu0 %1260
          %1262 = vrot.lane.b32.xlu0 %v1202, 127
          %v1263 = vpop.permute.xlu0 %1262
          %1264 = vrot.lane.b32.xlu0 %v1203, 127
          %v1265 = vpop.permute.xlu0 %1264
          %1266 = vrot.lane.b32.xlu0 %v1204, 127
          %v1267 = vpop.permute.xlu0 %1266
          %1268 = vrot.lane.b32.xlu0 %v1205, 127
          %v1269 = vpop.permute.xlu0 %1268
          %1270 = vrot.lane.b32.xlu0 %v1206, 127
          %v1271 = vpop.permute.xlu0 %1270
          %1272 = vrot.lane.b32.xlu0 %v1207, 127
          %v1273 = vpop.permute.xlu0 %1272
          %1274 = vrot.lane.b32.xlu0 %v1208, 127
          %v1275 = vpop.permute.xlu0 %1274
          %v1284 = vsel %vm1211, %v1215, %v1261
          %v1285 = vsel %vm1211, %v1220, %v1263
          %v1286 = vsel %vm1211, %v1225, %v1265
          %v1287 = vsel %vm1211, %v1230, %v1267
          %v1288 = vsel %vm1211, %v1235, %v1269
          %v1289 = vsel %vm1211, %v1240, %v1271
          %v1290 = vsel %vm1211, %v1245, %v1273
          %v1291 = vsel %vm1211, %v1250, %v1275
          %s1292 = scalar_lea.vmem [#allocation8], %s51
          %vm1293 = vcmask 130048
          %1294 = vst.msk [vmem:[%s1292] sm:$0xff] %vm1293, %v1284
          %1295 = vst.msk [vmem:[%s1292 + $0x8] sm:$0xff] %vm1293, %v1285
          %1296 = vst.msk [vmem:[%s1292 + $0x10] sm:$0xff] %vm1293, %v1286
          %1297 = vst.msk [vmem:[%s1292 + $0x18] sm:$0xff] %vm1293, %v1287
          %1298 = vst.msk [vmem:[%s1292 + $0x20] sm:$0xff] %vm1293, %v1288
          %1299 = vst.msk [vmem:[%s1292 + $0x28] sm:$0xff] %vm1293, %v1289
          %1300 = vst.msk [vmem:[%s1292 + $0x30] sm:$0xff] %vm1293, %v1290
          %1301 = vst.msk [vmem:[%s1292 + $0x38] sm:$0xff] %vm1293, %v1291
        $region80: #{tpu_custom_call.1} parent=19 // pred_fallthru
          _
        %p1302 = scmp.eq.s32.totalorder %s50, 2
        // Predicated region
        $region81: #{tpu_custom_call.1} parent=19 // pred_check
          %p1303 = pneg %p1302
        $region82: #{tpu_custom_call.1} parent=19 // pred_check_branch
          %1305 = sbr.rel (%p1303) target = $region84
        $region83: #{tpu_custom_call.1} parent=19 // pred_region
          %vm1306 = vcmask 1047680
          %1307 = vrot.lane.b32.xlu0 %v550, 16
          %v1308 = vpop.permute.xlu0 %1307
          %v1309 = vsel %vm1306, %v1308, %v550
          %1310 = vrot.lane.b32.xlu0 %v551, 16
          %v1311 = vpop.permute.xlu0 %1310
          %v1312 = vsel %vm1306, %v1311, %v551
          %1313 = vrot.lane.b32.xlu0 %v552, 16
          %v1314 = vpop.permute.xlu0 %1313
          %v1315 = vsel %vm1306, %v1314, %v552
          %1316 = vrot.lane.b32.xlu0 %v553, 16
          %v1317 = vpop.permute.xlu0 %1316
          %v1318 = vsel %vm1306, %v1317, %v553
          %1319 = vrot.lane.b32.xlu0 %v554, 16
          %v1320 = vpop.permute.xlu0 %1319
          %v1321 = vsel %vm1306, %v1320, %v554
          %1322 = vrot.lane.b32.xlu0 %v555, 16
          %v1323 = vpop.permute.xlu0 %1322
          %v1324 = vsel %vm1306, %v1323, %v555
          %1325 = vrot.lane.b32.xlu0 %v556, 16
          %v1326 = vpop.permute.xlu0 %1325
          %v1327 = vsel %vm1306, %v1326, %v556
          %1328 = vrot.lane.b32.xlu0 %v557, 16
          %v1329 = vpop.permute.xlu0 %1328
          %v1330 = vsel %vm1306, %v1329, %v557
          %1331 = vrot.lane.b32.xlu0 %v1309, 16
          %v1332 = vpop.permute.xlu0 %1331
          %1333 = vrot.lane.b32.xlu0 %v1312, 16
          %v1334 = vpop.permute.xlu0 %1333
          %1335 = vrot.lane.b32.xlu0 %v1315, 16
          %v1336 = vpop.permute.xlu0 %1335
          %1337 = vrot.lane.b32.xlu0 %v1318, 16
          %v1338 = vpop.permute.xlu0 %1337
          %1339 = vrot.lane.b32.xlu0 %v1321, 16
          %v1340 = vpop.permute.xlu0 %1339
          %1341 = vrot.lane.b32.xlu0 %v1324, 16
          %v1342 = vpop.permute.xlu0 %1341
          %1343 = vrot.lane.b32.xlu0 %v1327, 16
          %v1344 = vpop.permute.xlu0 %1343
          %1345 = vrot.lane.b32.xlu0 %v1330, 16
          %v1346 = vpop.permute.xlu0 %1345
          %v1347 = vsel %vm1306, %v1332, %v550
          %v1348 = vsel %vm1306, %v1334, %v551
          %v1349 = vsel %vm1306, %v1336, %v552
          %v1350 = vsel %vm1306, %v1338, %v553
          %v1351 = vsel %vm1306, %v1340, %v554
          %v1352 = vsel %vm1306, %v1342, %v555
          %v1353 = vsel %vm1306, %v1344, %v556
          %v1354 = vsel %vm1306, %v1346, %v557
          %vm1355 = vcmp.ge.s32.totalorder %v33, 14
          %v1356 = vsel %vm1355, 1, 0
          %vm1357 = vcmp.eq.s32.totalorder %v1356, 1
          %1359 = vset.pattern.permute.xlu0 15
          %1360 = vperm.xlu0 %1359, %v550
          %v1361 = vpop.permute.xlu0 %1360
          %1364 = vset.pattern.permute.xlu0 15
          %1365 = vperm.xlu0 %1364, %v551
          %v1366 = vpop.permute.xlu0 %1365
          %1369 = vset.pattern.permute.xlu0 15
          %1370 = vperm.xlu0 %1369, %v552
          %v1371 = vpop.permute.xlu0 %1370
          %1374 = vset.pattern.permute.xlu0 15
          %1375 = vperm.xlu0 %1374, %v553
          %v1376 = vpop.permute.xlu0 %1375
          %1379 = vset.pattern.permute.xlu0 15
          %1380 = vperm.xlu0 %1379, %v554
          %v1381 = vpop.permute.xlu0 %1380
          %1384 = vset.pattern.permute.xlu0 15
          %1385 = vperm.xlu0 %1384, %v555
          %v1386 = vpop.permute.xlu0 %1385
          %1389 = vset.pattern.permute.xlu0 15
          %1390 = vperm.xlu0 %1389, %v556
          %v1391 = vpop.permute.xlu0 %1390
          %1394 = vset.pattern.permute.xlu0 15
          %1395 = vperm.xlu0 %1394, %v557
          %v1396 = vpop.permute.xlu0 %1395
          %1406 = vrot.lane.b32.xlu0 %v1347, 126
          %v1407 = vpop.permute.xlu0 %1406
          %1408 = vrot.lane.b32.xlu0 %v1348, 126
          %v1409 = vpop.permute.xlu0 %1408
          %1410 = vrot.lane.b32.xlu0 %v1349, 126
          %v1411 = vpop.permute.xlu0 %1410
          %1412 = vrot.lane.b32.xlu0 %v1350, 126
          %v1413 = vpop.permute.xlu0 %1412
          %1414 = vrot.lane.b32.xlu0 %v1351, 126
          %v1415 = vpop.permute.xlu0 %1414
          %1416 = vrot.lane.b32.xlu0 %v1352, 126
          %v1417 = vpop.permute.xlu0 %1416
          %1418 = vrot.lane.b32.xlu0 %v1353, 126
          %v1419 = vpop.permute.xlu0 %1418
          %1420 = vrot.lane.b32.xlu0 %v1354, 126
          %v1421 = vpop.permute.xlu0 %1420
          %v1430 = vsel %vm1357, %v1361, %v1407
          %v1431 = vsel %vm1357, %v1366, %v1409
          %v1432 = vsel %vm1357, %v1371, %v1411
          %v1433 = vsel %vm1357, %v1376, %v1413
          %v1434 = vsel %vm1357, %v1381, %v1415
          %v1435 = vsel %vm1357, %v1386, %v1417
          %v1436 = vsel %vm1357, %v1391, %v1419
          %v1437 = vsel %vm1357, %v1396, %v1421
          %s1438 = scalar_lea.vmem [#allocation8], %s51
          %vm1439 = vcmask 130048
          %1440 = vst.msk [vmem:[%s1438] sm:$0xff] %vm1439, %v1430
          %1441 = vst.msk [vmem:[%s1438 + $0x8] sm:$0xff] %vm1439, %v1431
          %1442 = vst.msk [vmem:[%s1438 + $0x10] sm:$0xff] %vm1439, %v1432
          %1443 = vst.msk [vmem:[%s1438 + $0x18] sm:$0xff] %vm1439, %v1433
          %1444 = vst.msk [vmem:[%s1438 + $0x20] sm:$0xff] %vm1439, %v1434
          %1445 = vst.msk [vmem:[%s1438 + $0x28] sm:$0xff] %vm1439, %v1435
          %1446 = vst.msk [vmem:[%s1438 + $0x30] sm:$0xff] %vm1439, %v1436
          %1447 = vst.msk [vmem:[%s1438 + $0x38] sm:$0xff] %vm1439, %v1437
        $region84: #{tpu_custom_call.1} parent=19 // pred_fallthru
          _
        %p1448 = scmp.eq.s32.totalorder %s50, 3
        // Predicated region
        $region85: #{tpu_custom_call.1} parent=19 // pred_check
          %p1449 = pneg %p1448
        $region86: #{tpu_custom_call.1} parent=19 // pred_check_branch
          %1451 = sbr.rel (%p1449) target = $region88
        $region87: #{tpu_custom_call.1} parent=19 // pred_region
          %vm1452 = vcmask 1047680
          %1453 = vrot.lane.b32.xlu0 %v550, 16
          %v1454 = vpop.permute.xlu0 %1453
          %v1455 = vsel %vm1452, %v1454, %v550
          %1456 = vrot.lane.b32.xlu0 %v551, 16
          %v1457 = vpop.permute.xlu0 %1456
          %v1458 = vsel %vm1452, %v1457, %v551
          %1459 = vrot.lane.b32.xlu0 %v552, 16
          %v1460 = vpop.permute.xlu0 %1459
          %v1461 = vsel %vm1452, %v1460, %v552
          %1462 = vrot.lane.b32.xlu0 %v553, 16
          %v1463 = vpop.permute.xlu0 %1462
          %v1464 = vsel %vm1452, %v1463, %v553
          %1465 = vrot.lane.b32.xlu0 %v554, 16
          %v1466 = vpop.permute.xlu0 %1465
          %v1467 = vsel %vm1452, %v1466, %v554
          %1468 = vrot.lane.b32.xlu0 %v555, 16
          %v1469 = vpop.permute.xlu0 %1468
          %v1470 = vsel %vm1452, %v1469, %v555
          %1471 = vrot.lane.b32.xlu0 %v556, 16
          %v1472 = vpop.permute.xlu0 %1471
          %v1473 = vsel %vm1452, %v1472, %v556
          %1474 = vrot.lane.b32.xlu0 %v557, 16
          %v1475 = vpop.permute.xlu0 %1474
          %v1476 = vsel %vm1452, %v1475, %v557
          %1477 = vrot.lane.b32.xlu0 %v1455, 16
          %v1478 = vpop.permute.xlu0 %1477
          %1479 = vrot.lane.b32.xlu0 %v1458, 16
          %v1480 = vpop.permute.xlu0 %1479
          %1481 = vrot.lane.b32.xlu0 %v1461, 16
          %v1482 = vpop.permute.xlu0 %1481
          %1483 = vrot.lane.b32.xlu0 %v1464, 16
          %v1484 = vpop.permute.xlu0 %1483
          %1485 = vrot.lane.b32.xlu0 %v1467, 16
          %v1486 = vpop.permute.xlu0 %1485
          %1487 = vrot.lane.b32.xlu0 %v1470, 16
          %v1488 = vpop.permute.xlu0 %1487
          %1489 = vrot.lane.b32.xlu0 %v1473, 16
          %v1490 = vpop.permute.xlu0 %1489
          %1491 = vrot.lane.b32.xlu0 %v1476, 16
          %v1492 = vpop.permute.xlu0 %1491
          %v1493 = vsel %vm1452, %v1478, %v550
          %v1494 = vsel %vm1452, %v1480, %v551
          %v1495 = vsel %vm1452, %v1482, %v552
          %v1496 = vsel %vm1452, %v1484, %v553
          %v1497 = vsel %vm1452, %v1486, %v554
          %v1498 = vsel %vm1452, %v1488, %v555
          %v1499 = vsel %vm1452, %v1490, %v556
          %v1500 = vsel %vm1452, %v1492, %v557
          %vm1501 = vcmp.ge.s32.totalorder %v33, 13
          %v1502 = vsel %vm1501, 1, 0
          %vm1503 = vcmp.eq.s32.totalorder %v1502, 1
          %1505 = vset.pattern.permute.xlu0 15
          %1506 = vperm.xlu0 %1505, %v550
          %v1507 = vpop.permute.xlu0 %1506
          %1510 = vset.pattern.permute.xlu0 15
          %1511 = vperm.xlu0 %1510, %v551
          %v1512 = vpop.permute.xlu0 %1511
          %1515 = vset.pattern.permute.xlu0 15
          %1516 = vperm.xlu0 %1515, %v552
          %v1517 = vpop.permute.xlu0 %1516
          %1520 = vset.pattern.permute.xlu0 15
          %1521 = vperm.xlu0 %1520, %v553
          %v1522 = vpop.permute.xlu0 %1521
          %1525 = vset.pattern.permute.xlu0 15
          %1526 = vperm.xlu0 %1525, %v554
          %v1527 = vpop.permute.xlu0 %1526
          %1530 = vset.pattern.permute.xlu0 15
          %1531 = vperm.xlu0 %1530, %v555
          %v1532 = vpop.permute.xlu0 %1531
          %1535 = vset.pattern.permute.xlu0 15
          %1536 = vperm.xlu0 %1535, %v556
          %v1537 = vpop.permute.xlu0 %1536
          %1540 = vset.pattern.permute.xlu0 15
          %1541 = vperm.xlu0 %1540, %v557
          %v1542 = vpop.permute.xlu0 %1541
          %1552 = vrot.lane.b32.xlu0 %v1493, 125
          %v1553 = vpop.permute.xlu0 %1552
          %1554 = vrot.lane.b32.xlu0 %v1494, 125
          %v1555 = vpop.permute.xlu0 %1554
          %1556 = vrot.lane.b32.xlu0 %v1495, 125
          %v1557 = vpop.permute.xlu0 %1556
          %1558 = vrot.lane.b32.xlu0 %v1496, 125
          %v1559 = vpop.permute.xlu0 %1558
          %1560 = vrot.lane.b32.xlu0 %v1497, 125
          %v1561 = vpop.permute.xlu0 %1560
          %1562 = vrot.lane.b32.xlu0 %v1498, 125
          %v1563 = vpop.permute.xlu0 %1562
          %1564 = vrot.lane.b32.xlu0 %v1499, 125
          %v1565 = vpop.permute.xlu0 %1564
          %1566 = vrot.lane.b32.xlu0 %v1500, 125
          %v1567 = vpop.permute.xlu0 %1566
          %v1576 = vsel %vm1503, %v1507, %v1553
          %v1577 = vsel %vm1503, %v1512, %v1555
          %v1578 = vsel %vm1503, %v1517, %v1557
          %v1579 = vsel %vm1503, %v1522, %v1559
          %v1580 = vsel %vm1503, %v1527, %v1561
          %v1581 = vsel %vm1503, %v1532, %v1563
          %v1582 = vsel %vm1503, %v1537, %v1565
          %v1583 = vsel %vm1503, %v1542, %v1567
          %s1584 = scalar_lea.vmem [#allocation8], %s51
          %vm1585 = vcmask 130048
          %1586 = vst.msk [vmem:[%s1584] sm:$0xff] %vm1585, %v1576
          %1587 = vst.msk [vmem:[%s1584 + $0x8] sm:$0xff] %vm1585, %v1577
          %1588 = vst.msk [vmem:[%s1584 + $0x10] sm:$0xff] %vm1585, %v1578
          %1589 = vst.msk [vmem:[%s1584 + $0x18] sm:$0xff] %vm1585, %v1579
          %1590 = vst.msk [vmem:[%s1584 + $0x20] sm:$0xff] %vm1585, %v1580
          %1591 = vst.msk [vmem:[%s1584 + $0x28] sm:$0xff] %vm1585, %v1581
          %1592 = vst.msk [vmem:[%s1584 + $0x30] sm:$0xff] %vm1585, %v1582
          %1593 = vst.msk [vmem:[%s1584 + $0x38] sm:$0xff] %vm1585, %v1583
        $region88: #{tpu_custom_call.1} parent=19 // pred_fallthru
          _
        %p1594 = scmp.eq.s32.totalorder %s50, 4
        // Predicated region
        $region89: #{tpu_custom_call.1} parent=19 // pred_check
          %p1595 = pneg %p1594
        $region90: #{tpu_custom_call.1} parent=19 // pred_check_branch
          %1597 = sbr.rel (%p1595) target = $region92
        $region91: #{tpu_custom_call.1} parent=19 // pred_region
          %vm1598 = vcmask 1047680
          %1599 = vrot.lane.b32.xlu0 %v550, 16
          %v1600 = vpop.permute.xlu0 %1599
          %v1601 = vsel %vm1598, %v1600, %v550
          %1602 = vrot.lane.b32.xlu0 %v551, 16
          %v1603 = vpop.permute.xlu0 %1602
          %v1604 = vsel %vm1598, %v1603, %v551
          %1605 = vrot.lane.b32.xlu0 %v552, 16
          %v1606 = vpop.permute.xlu0 %1605
          %v1607 = vsel %vm1598, %v1606, %v552
          %1608 = vrot.lane.b32.xlu0 %v553, 16
          %v1609 = vpop.permute.xlu0 %1608
          %v1610 = vsel %vm1598, %v1609, %v553
          %1611 = vrot.lane.b32.xlu0 %v554, 16
          %v1612 = vpop.permute.xlu0 %1611
          %v1613 = vsel %vm1598, %v1612, %v554
          %1614 = vrot.lane.b32.xlu0 %v555, 16
          %v1615 = vpop.permute.xlu0 %1614
          %v1616 = vsel %vm1598, %v1615, %v555
          %1617 = vrot.lane.b32.xlu0 %v556, 16
          %v1618 = vpop.permute.xlu0 %1617
          %v1619 = vsel %vm1598, %v1618, %v556
          %1620 = vrot.lane.b32.xlu0 %v557, 16
          %v1621 = vpop.permute.xlu0 %1620
          %v1622 = vsel %vm1598, %v1621, %v557
          %1623 = vrot.lane.b32.xlu0 %v1601, 16
          %v1624 = vpop.permute.xlu0 %1623
          %1625 = vrot.lane.b32.xlu0 %v1604, 16
          %v1626 = vpop.permute.xlu0 %1625
          %1627 = vrot.lane.b32.xlu0 %v1607, 16
          %v1628 = vpop.permute.xlu0 %1627
          %1629 = vrot.lane.b32.xlu0 %v1610, 16
          %v1630 = vpop.permute.xlu0 %1629
          %1631 = vrot.lane.b32.xlu0 %v1613, 16
          %v1632 = vpop.permute.xlu0 %1631
          %1633 = vrot.lane.b32.xlu0 %v1616, 16
          %v1634 = vpop.permute.xlu0 %1633
          %1635 = vrot.lane.b32.xlu0 %v1619, 16
          %v1636 = vpop.permute.xlu0 %1635
          %1637 = vrot.lane.b32.xlu0 %v1622, 16
          %v1638 = vpop.permute.xlu0 %1637
          %v1639 = vsel %vm1598, %v1624, %v550
          %v1640 = vsel %vm1598, %v1626, %v551
          %v1641 = vsel %vm1598, %v1628, %v552
          %v1642 = vsel %vm1598, %v1630, %v553
          %v1643 = vsel %vm1598, %v1632, %v554
          %v1644 = vsel %vm1598, %v1634, %v555
          %v1645 = vsel %vm1598, %v1636, %v556
          %v1646 = vsel %vm1598, %v1638, %v557
          %vm1647 = vcmp.ge.s32.totalorder %v33, 12
          %v1648 = vsel %vm1647, 1, 0
          %vm1649 = vcmp.eq.s32.totalorder %v1648, 1
          %1651 = vset.pattern.permute.xlu0 15
          %1652 = vperm.xlu0 %1651, %v550
          %v1653 = vpop.permute.xlu0 %1652
          %1656 = vset.pattern.permute.xlu0 15
          %1657 = vperm.xlu0 %1656, %v551
          %v1658 = vpop.permute.xlu0 %1657
          %1661 = vset.pattern.permute.xlu0 15
          %1662 = vperm.xlu0 %1661, %v552
          %v1663 = vpop.permute.xlu0 %1662
          %1666 = vset.pattern.permute.xlu0 15
          %1667 = vperm.xlu0 %1666, %v553
          %v1668 = vpop.permute.xlu0 %1667
          %1671 = vset.pattern.permute.xlu0 15
          %1672 = vperm.xlu0 %1671, %v554
          %v1673 = vpop.permute.xlu0 %1672
          %1676 = vset.pattern.permute.xlu0 15
          %1677 = vperm.xlu0 %1676, %v555
          %v1678 = vpop.permute.xlu0 %1677
          %1681 = vset.pattern.permute.xlu0 15
          %1682 = vperm.xlu0 %1681, %v556
          %v1683 = vpop.permute.xlu0 %1682
          %1686 = vset.pattern.permute.xlu0 15
          %1687 = vperm.xlu0 %1686, %v557
          %v1688 = vpop.permute.xlu0 %1687
          %1698 = vrot.lane.b32.xlu0 %v1639, 124
          %v1699 = vpop.permute.xlu0 %1698
          %1700 = vrot.lane.b32.xlu0 %v1640, 124
          %v1701 = vpop.permute.xlu0 %1700
          %1702 = vrot.lane.b32.xlu0 %v1641, 124
          %v1703 = vpop.permute.xlu0 %1702
          %1704 = vrot.lane.b32.xlu0 %v1642, 124
          %v1705 = vpop.permute.xlu0 %1704
          %1706 = vrot.lane.b32.xlu0 %v1643, 124
          %v1707 = vpop.permute.xlu0 %1706
          %1708 = vrot.lane.b32.xlu0 %v1644, 124
          %v1709 = vpop.permute.xlu0 %1708
          %1710 = vrot.lane.b32.xlu0 %v1645, 124
          %v1711 = vpop.permute.xlu0 %1710
          %1712 = vrot.lane.b32.xlu0 %v1646, 124
          %v1713 = vpop.permute.xlu0 %1712
          %v1722 = vsel %vm1649, %v1653, %v1699
          %v1723 = vsel %vm1649, %v1658, %v1701
          %v1724 = vsel %vm1649, %v1663, %v1703
          %v1725 = vsel %vm1649, %v1668, %v1705
          %v1726 = vsel %vm1649, %v1673, %v1707
          %v1727 = vsel %vm1649, %v1678, %v1709
          %v1728 = vsel %vm1649, %v1683, %v1711
          %v1729 = vsel %vm1649, %v1688, %v1713
          %s1730 = scalar_lea.vmem [#allocation8], %s51
          %vm1731 = vcmask 130048
          %1732 = vst.msk [vmem:[%s1730] sm:$0xff] %vm1731, %v1722
          %1733 = vst.msk [vmem:[%s1730 + $0x8] sm:$0xff] %vm1731, %v1723
          %1734 = vst.msk [vmem:[%s1730 + $0x10] sm:$0xff] %vm1731, %v1724
          %1735 = vst.msk [vmem:[%s1730 + $0x18] sm:$0xff] %vm1731, %v1725
          %1736 = vst.msk [vmem:[%s1730 + $0x20] sm:$0xff] %vm1731, %v1726
          %1737 = vst.msk [vmem:[%s1730 + $0x28] sm:$0xff] %vm1731, %v1727
          %1738 = vst.msk [vmem:[%s1730 + $0x30] sm:$0xff] %vm1731, %v1728
          %1739 = vst.msk [vmem:[%s1730 + $0x38] sm:$0xff] %vm1731, %v1729
        $region92: #{tpu_custom_call.1} parent=19 // pred_fallthru
          _
      $region20: #{tpu_custom_call.1} parent=13 // pred_fallthru
        _
    $region14: #{tpu_custom_call.1} parent=1 // loop_footer
      %s39 = sadd.s32 1, %s35
    $region15: #{tpu_custom_call.1} parent=1 // loop_footer_branch
      %34 = sbr.rel target = $region11
    $region16: #{tpu_custom_call.1} parent=1 // loop_exit
      _
    // Predicated region
    $region93: #{tpu_custom_call.1} parent=1 // pred_check
      _
    $region94: #{tpu_custom_call.1} parent=1 // pred_check_branch
      %1741 = sbr.rel (0) target = $region96
    $region95: #{tpu_custom_call.1} parent=1 // pred_region
      %s1743 = ssub.s32 4096, 4096
      %1744 = vsyncadd [#allocation7], %s1743
      %s1745 = sshll.u32 [#allocation8], 4
      %s1746 = int_to_ptr.vmem [resolvable:$true] %s1745
      %1751 = dma.vmem_to_hbm [thread:$0]  %s1746, 4096, %s2, [#allocation7], 128, 128, 8
    $region96: #{tpu_custom_call.1} parent=1 // pred_fallthru
      _
    // Predicated region
    $region97: #{tpu_custom_call.1} parent=1 // pred_check
      _
    $region98: #{tpu_custom_call.1} parent=1 // pred_check_branch
      %1753 = sbr.rel (0) target = $region100
    $region99: #{tpu_custom_call.1} parent=1 // pred_region
      %1754 = dma.done [#allocation7], 4096
    $region100: #{tpu_custom_call.1} parent=1 // pred_fallthru
      _
    %1755 = vsyncpa [#allocation6], 1
    %1756 = vsyncpa [#allocation7], 1

</llo_original>
